<compile_context>
chip_gen: v7x
topology: tpu7x:2x2x1
jax: 0.10.0
libtpu: 0.0.40
codegen_flags: <defaults>
</compile_context>

<pallas_src>
import numpy as np
import jax
import jax.numpy as jnp
from jax.experimental import pallas as pl
from jax.experimental.pallas import tpu as pltpu


# ------------------------------ host helpers ------------------------------- #
def _out_size(n):
    # Conv2d(kernel=3, stride=2, padding=1) output size.
    return (n + 1) // 2


def _round_up(n, m):
    return ((n + m - 1) // m) * m


def _stacked_gather_matrix(ih, iw, oh, ow, m_out_pad, m_in_pad):
    """Tap-stacked 0/1 gather matrix for a 3x3/stride-2/pad-1 conv.

    Row (t*m_out_pad + m) selects the source pixel feeding output position m
    under kernel tap t (all-zero for padding taps / padded rows), so
        S @ A  ==  per-tap im2col rows of A, stacked tap-major along sublanes.
    Entries are 0/1 -> exact in bfloat16.
    """
    s = np.zeros((9 * m_out_pad, m_in_pad), np.float32)
    for ki in range(3):
        for kj in range(3):
            t = ki * 3 + kj
            for a in range(oh):
                sh = 2 * a + ki - 1
                if not 0 <= sh < ih:
                    continue
                for b in range(ow):
                    sw = 2 * b + kj - 1
                    if not 0 <= sw < iw:
                        continue
                    s[t * m_out_pad + a * ow + b, sh * iw + sw] = 1.0
    return jnp.asarray(s, jnp.bfloat16)


def _prep_weight(w_oihw):
    """(Cout, Cin, 3, 3) -> (9*Cin, Cout), row = (ki*3+kj)*Cin + cin, bf16."""
    cout, cin, kh, kw = w_oihw.shape
    w = jnp.transpose(w_oihw, (2, 3, 1, 0)).reshape(kh * kw * cin, cout)
    return w.astype(jnp.bfloat16)


def _prep_bias(b):
    return b.reshape(1, -1).astype(jnp.float32)


def _im2col_stride2(x_nchw, oh, ow):
    """Host-side im2col for the first conv: (N,C,H,W) -> (N, oh*ow, 9*C).

    Column order (tap-major, channel-minor) matches _prep_weight.
    """
    n, c, _, _ = x_nchw.shape
    xp = jnp.pad(x_nchw, ((0, 0), (0, 0), (1, 1), (1, 1)))
    cols = []
    for ki in range(3):
        for kj in range(3):
            sl = xp[:, :, ki:ki + 2 * oh:2, kj:kj + 2 * ow:2]   # (N, C, oh, ow)
            cols.append(jnp.transpose(sl, (0, 2, 3, 1)).reshape(n, oh * ow, c))
    return jnp.concatenate(cols, axis=-1)                        # (N, oh*ow, 9C)


# ------------------------------ Pallas kernel ------------------------------ #
def _make_kernel(nb, m1, m2, m3):
    """nb images per grid step; m1/m2/m3 = padded rows per image per layer."""

    def kernel(p_ref, s2_ref, s3_ref, w1_ref, w2_ref, w3_ref,
               b1_ref, b2_ref, b3_ref, o_ref):

        def fused_conv(a_bf, m_in, s_ref, m_out, w_ref, b_ref):
            # a_bf : (nb*m_in, C) bf16, batch stacked along rows, channels-last
            # s_ref: (9*m_out, m_in) bf16 tap-stacked 0/1 gather matrix
            # w_ref: (9*C, Cout)   bf16 K-concatenated conv weights
            # b_ref: (1, Cout)     f32
            s = s_ref[...]
            parts = []
            for i in range(nb):                       # static unroll over batch
                a_i = a_bf[i * m_in:(i + 1) * m_in, :]
                # One MXU matmul gathers all 9 taps (RHS a_i loaded once).
                p = jnp.dot(s, a_i, preferred_element_type=jnp.float32)
                # Stack taps along lanes -> im2col block (m_out, 9*C).
                parts.append(jnp.concatenate(
                    [p[t * m_out:(t + 1) * m_out, :] for t in range(9)], axis=1))
            g = parts[0] if nb == 1 else jnp.concatenate(parts, axis=0)
            g = g.astype(jnp.bfloat16)   # exact: entries are 0/1 gathers of bf16
            out = jnp.dot(g, w_ref[...], preferred_element_type=jnp.float32)
            # Epilogue: single f32 bias-add + ReLU (no accumulator / zero-init).
            return jnp.maximum(out + b_ref[...], 0.0)

        # ---- layer 1: host-side im2col -> one MXU matmul for whole batch ----
        a1 = jnp.dot(p_ref[...], w1_ref[...], preferred_element_type=jnp.float32)
        a1 = jnp.maximum(a1 + b1_ref[...], 0.0).astype(jnp.bfloat16)  # (nb*m1, 64)

        # ---- layers 2/3: in-VMEM gather + single K-concatenated matmul ------
        a2 = fused_conv(a1, m1, s2_ref, m2, w2_ref, b2_ref).astype(jnp.bfloat16)
        a3 = fused_conv(a2, m2, s3_ref, m3, w3_ref, b3_ref)    # (nb*m3, Cout) f32
        o_ref[...] = a3

    return kernel


# --------------------------------- Encoder --------------------------------- #
def encoder_forward(params, x_nchw, *, batch_block=8):
    w1, b1 = params["block1"]
    w2, b2 = params["block2"]
    w3, b3 = params["block3"]

    n, cin, h, w = x_nchw.shape
    c3 = w3.shape[0]
    oh1, ow1 = _out_size(h), _out_size(w)
    oh2, ow2 = _out_size(oh1), _out_size(ow1)
    oh3, ow3 = _out_size(oh2), _out_size(ow2)
    m1, m2, m3 = oh1 * ow1, oh2 * ow2, oh3 * ow3
    # Per-image row counts padded to the 8-sublane granule.  Padded rows are
    # never selected by the gather matrices, so they cannot contaminate
    # real outputs; padded layer-3 rows are sliced off on the host.
    m1p, m2p, m3p = _round_up(m1, 8), _round_up(m2, 8), _round_up(m3, 8)

    nb = min(n, batch_block)           # images folded into M per grid step
    n_pad = _round_up(n, nb)
    num_steps = n_pad // nb

    # Constant tables (bf16, ~130 KiB total at 16x16 input).
    s2 = _stacked_gather_matrix(oh1, ow1, oh2, ow2, m2p, m1p)   # (9*m2p, m1p)
    s3 = _stacked_gather_matrix(oh2, ow2, oh3, ow3, m3p, m2p)   # (9*m3p, m2p)
    w1c, w2c, w3c = _prep_weight(w1), _prep_weight(w2), _prep_weight(w3)
    b1r, b2r, b3r = _prep_bias(b1), _prep_bias(b2), _prep_bias(b3)

    # Layer-1 im2col on the host (tiny), single NCHW -> channels-last boundary.
    p = _im2col_stride2(x_nchw, oh1, ow1)                       # (N, m1, 9*cin)
    p = jnp.pad(p, ((0, n_pad - n), (0, m1p - m1), (0, 0)))
    patches = p.reshape(n_pad * m1p, 9 * cin).astype(jnp.bfloat16)

    kernel = _make_kernel(nb, m1p, m2p, m3p)

    def const_spec(arr):
        if num_steps > 1:
            # Grid-invariant constants: single-buffer (no 2x VMEM / re-DMA).
            return pl.BlockSpec(arr.shape, lambda i: (0, 0),
                                pipeline_mode=pl.Buffered(1))
        return pl.BlockSpec(arr.shape, lambda i: (0, 0))

    out_flat = pl.pallas_call(
        kernel,
        out_shape=jax.ShapeDtypeStruct((n_pad * m3p, c3), jnp.float32),
        grid=(num_steps,),
        in_specs=[
            pl.BlockSpec((nb * m1p, 9 * cin), lambda i: (i, 0)),
            const_spec(s2), const_spec(s3),
            const_spec(w1c), const_spec(w2c), const_spec(w3c),
            const_spec(b1r), const_spec(b2r), const_spec(b3r),
        ],
        out_specs=pl.BlockSpec((nb * m3p, c3), lambda i: (i, 0)),
        compiler_params=pltpu.CompilerParams(
            dimension_semantics=("parallel",),
        ),
    )(patches, s2, s3, w1c, w2c, w3c, b1r, b2r, b3r)

    # Drop batch/row padding, single channels-last -> NCHW boundary.
    out = out_flat.reshape(n_pad, m3p, c3)[:n, :m3, :]
    out = out.reshape(n, oh3, ow3, c3).transpose(0, 3, 1, 2)
    return out


# ----------------------------- init / reference ---------------------------- #
def init_conv_params(key, in_ch, out_ch):
    k_w, k_b = jax.random.split(key)
    bound = 1.0 / float(np.sqrt(in_ch * 9))
    wgt = jax.random.uniform(k_w, (out_ch, in_ch, 3, 3), jnp.float32, -bound, bound)
    bias = jax.random.uniform(k_b, (out_ch,), jnp.float32, -bound, bound)
    return wgt, bias


def init_encoder_params(key, input_dim, output_dim):
    k1, k2, k3 = jax.random.split(key, 3)
    return {
        "block1": init_conv_params(k1, input_dim, 64),
        "block2": init_conv_params(k2, 64, 64),
        "block3": init_conv_params(k3, 64, output_dim),
    }


def _reference_encoder(params, x):
    def conv_block(x, w, b):
        y = jax.lax.conv_general_dilated(
            x, w, window_strides=(2, 2), padding=((1, 1), (1, 1)),
            dimension_numbers=("NCHW", "OIHW", "NCHW"),
            precision=jax.lax.Precision.HIGHEST)
        return jnp.maximum(y + b[None, :, None, None], 0.0)

    for name in ("block1", "block2", "block3"):
        x = conv_block(x, *params[name])
    return x


# ----------------------------------- Main ----------------------------------- #
if __name__ == "__main__":
    key = jax.random.PRNGKey(0)
    k_params, k_input = jax.random.split(key)

    input_dim, output_dim = 4, 32
    params = init_encoder_params(k_params, input_dim, output_dim)
    x = jax.random.normal(k_input, (2, input_dim, 16, 16), jnp.float32)  # NCHW

    fwd = jax.jit(encoder_forward)
    out = jax.block_until_ready(fwd(params, x))

    # 16 -> 8 -> 4 -> 2 through three stride-2 convs.
    assert out.shape == (2, output_dim, 2, 2), out.shape
    assert bool(jnp.all(out >= 0.0))  # ReLU applied

    ref = _reference_encoder(params, x)
    max_err = float(jnp.max(jnp.abs(out - ref)))
    # bf16 MXU operands (weights / activations) vs f32 HIGHEST reference.
    assert jnp.allclose(out, ref, atol=2e-2, rtol=2e-2), max_err

    print("KERNEL_OK")
</pallas_src>

<mosaic_0001>
module attributes {stable_mosaic.version = 11 : i64} {
  func.func @kernel(%arg0: i32, %arg1: memref<128x36xbf16, #tpu.memory_space<vmem>>, %arg2: memref<144x64xbf16, #tpu.memory_space<vmem>>, %arg3: memref<72x16xbf16, #tpu.memory_space<vmem>>, %arg4: memref<36x64xbf16, #tpu.memory_space<vmem>>, %arg5: memref<576x64xbf16, #tpu.memory_space<vmem>>, %arg6: memref<576x32xbf16, #tpu.memory_space<vmem>>, %arg7: memref<1x64xf32, #tpu.memory_space<vmem>>, %arg8: memref<1x64xf32, #tpu.memory_space<vmem>>, %arg9: memref<1x32xf32, #tpu.memory_space<vmem>>, %arg10: memref<16x32xf32, #tpu.memory_space<vmem>>) attributes {dimension_semantics = [#tpu.dimension_semantics<parallel>], iteration_bounds = array<i64: 1>, scalar_prefetch = 0 : i64, scratch_operands = 0 : i64, tpu.core_type = #tpu.core_type<tc>, window_params = [{transform_indices = @transform_0, window_bounds = array<i64: 128, 36>}, {pipeline_mode = #tpu.pipeline_mode<synchronous>, transform_indices = @transform_1, window_bounds = array<i64: 144, 64>}, {pipeline_mode = #tpu.pipeline_mode<synchronous>, transform_indices = @transform_2, window_bounds = array<i64: 72, 16>}, {pipeline_mode = #tpu.pipeline_mode<synchronous>, transform_indices = @transform_3, window_bounds = array<i64: 36, 64>}, {pipeline_mode = #tpu.pipeline_mode<synchronous>, transform_indices = @transform_4, window_bounds = array<i64: 576, 64>}, {pipeline_mode = #tpu.pipeline_mode<synchronous>, transform_indices = @transform_5, window_bounds = array<i64: 576, 32>}, {pipeline_mode = #tpu.pipeline_mode<synchronous>, transform_indices = @transform_6, window_bounds = array<i64: 1, 64>}, {pipeline_mode = #tpu.pipeline_mode<synchronous>, transform_indices = @transform_7, window_bounds = array<i64: 1, 64>}, {pipeline_mode = #tpu.pipeline_mode<synchronous>, transform_indices = @transform_8, window_bounds = array<i64: 1, 32>}, {transform_indices = @transform_9, window_bounds = array<i64: 16, 32>}]} {
    %c0 = arith.constant 0 : index
    %c0_0 = arith.constant 0 : index
    %0 = vector.load %arg1[%c0, %c0_0] : memref<128x36xbf16, #tpu.memory_space<vmem>>, vector<128x36xbf16>
    %c0_1 = arith.constant 0 : index
    %c0_2 = arith.constant 0 : index
    %1 = vector.load %arg4[%c0_1, %c0_2] : memref<36x64xbf16, #tpu.memory_space<vmem>>, vector<36x64xbf16>
    %cst = arith.constant dense<0.000000e+00> : vector<128x64xf32>
    %2 = tpu.matmul %0, %1, %cst {dimension_numbers = #tpu.dot_dimension_numbers<[1], [0], [0], [1], [0, 0, 1, 1], [], []>} : vector<128x36xbf16>, vector<36x64xbf16>, vector<128x64xf32> -> vector<128x64xf32>
    %c0_3 = arith.constant 0 : index
    %c0_4 = arith.constant 0 : index
    %3 = vector.load %arg7[%c0_3, %c0_4] : memref<1x64xf32, #tpu.memory_space<vmem>>, vector<1x64xf32>
    %4 = vector.broadcast %3 : vector<1x64xf32> to vector<128x64xf32>
    %5 = arith.addf %2, %4 : vector<128x64xf32>
    %cst_5 = arith.constant 0.000000e+00 : f32
    %6 = vector.broadcast %cst_5 : f32 to vector<128x64xf32>
    %7 = arith.maximumf %5, %6 : vector<128x64xf32>
    %8 = arith.truncf %7 : vector<128x64xf32> to vector<128x64xbf16>
    %c0_6 = arith.constant 0 : index
    %c0_7 = arith.constant 0 : index
    %9 = vector.load %arg2[%c0_6, %c0_7] : memref<144x64xbf16, #tpu.memory_space<vmem>>, vector<144x64xbf16>
    %10 = vector.extract_strided_slice %8 {offsets = [0, 0], sizes = [64, 64], strides = [1, 1]} : vector<128x64xbf16> to vector<64x64xbf16>
    %cst_8 = arith.constant dense<0.000000e+00> : vector<144x64xf32>
    %11 = tpu.matmul %9, %10, %cst_8 {dimension_numbers = #tpu.dot_dimension_numbers<[1], [0], [0], [1], [0, 0, 1, 1], [], []>} : vector<144x64xbf16>, vector<64x64xbf16>, vector<144x64xf32> -> vector<144x64xf32>
    %12 = vector.extract_strided_slice %11 {offsets = [0, 0], sizes = [16, 64], strides = [1, 1]} : vector<144x64xf32> to vector<16x64xf32>
    %13 = vector.extract_strided_slice %11 {offsets = [16, 0], sizes = [16, 64], strides = [1, 1]} : vector<144x64xf32> to vector<16x64xf32>
    %14 = vector.extract_strided_slice %11 {offsets = [32, 0], sizes = [16, 64], strides = [1, 1]} : vector<144x64xf32> to vector<16x64xf32>
    %15 = vector.extract_strided_slice %11 {offsets = [48, 0], sizes = [16, 64], strides = [1, 1]} : vector<144x64xf32> to vector<16x64xf32>
    %16 = vector.extract_strided_slice %11 {offsets = [64, 0], sizes = [16, 64], strides = [1, 1]} : vector<144x64xf32> to vector<16x64xf32>
    %17 = vector.extract_strided_slice %11 {offsets = [80, 0], sizes = [16, 64], strides = [1, 1]} : vector<144x64xf32> to vector<16x64xf32>
    %18 = vector.extract_strided_slice %11 {offsets = [96, 0], sizes = [16, 64], strides = [1, 1]} : vector<144x64xf32> to vector<16x64xf32>
    %19 = vector.extract_strided_slice %11 {offsets = [112, 0], sizes = [16, 64], strides = [1, 1]} : vector<144x64xf32> to vector<16x64xf32>
    %20 = vector.extract_strided_slice %11 {offsets = [128, 0], sizes = [16, 64], strides = [1, 1]} : vector<144x64xf32> to vector<16x64xf32>
    %21 = tpu.concatenate %12, %13, %14, %15, %16, %17, %18, %19, %20 in 1 : vector<16x64xf32>, vector<16x64xf32>, vector<16x64xf32>, vector<16x64xf32>, vector<16x64xf32>, vector<16x64xf32>, vector<16x64xf32>, vector<16x64xf32>, vector<16x64xf32> -> vector<16x576xf32>
    %22 = vector.extract_strided_slice %8 {offsets = [64, 0], sizes = [64, 64], strides = [1, 1]} : vector<128x64xbf16> to vector<64x64xbf16>
    %cst_9 = arith.constant dense<0.000000e+00> : vector<144x64xf32>
    %23 = tpu.matmul %9, %22, %cst_9 {dimension_numbers = #tpu.dot_dimension_numbers<[1], [0], [0], [1], [0, 0, 1, 1], [], []>} : vector<144x64xbf16>, vector<64x64xbf16>, vector<144x64xf32> -> vector<144x64xf32>
    %24 = vector.extract_strided_slice %23 {offsets = [0, 0], sizes = [16, 64], strides = [1, 1]} : vector<144x64xf32> to vector<16x64xf32>
    %25 = vector.extract_strided_slice %23 {offsets = [16, 0], sizes = [16, 64], strides = [1, 1]} : vector<144x64xf32> to vector<16x64xf32>
    %26 = vector.extract_strided_slice %23 {offsets = [32, 0], sizes = [16, 64], strides = [1, 1]} : vector<144x64xf32> to vector<16x64xf32>
    %27 = vector.extract_strided_slice %23 {offsets = [48, 0], sizes = [16, 64], strides = [1, 1]} : vector<144x64xf32> to vector<16x64xf32>
    %28 = vector.extract_strided_slice %23 {offsets = [64, 0], sizes = [16, 64], strides = [1, 1]} : vector<144x64xf32> to vector<16x64xf32>
    %29 = vector.extract_strided_slice %23 {offsets = [80, 0], sizes = [16, 64], strides = [1, 1]} : vector<144x64xf32> to vector<16x64xf32>
    %30 = vector.extract_strided_slice %23 {offsets = [96, 0], sizes = [16, 64], strides = [1, 1]} : vector<144x64xf32> to vector<16x64xf32>
    %31 = vector.extract_strided_slice %23 {offsets = [112, 0], sizes = [16, 64], strides = [1, 1]} : vector<144x64xf32> to vector<16x64xf32>
    %32 = vector.extract_strided_slice %23 {offsets = [128, 0], sizes = [16, 64], strides = [1, 1]} : vector<144x64xf32> to vector<16x64xf32>
    %33 = tpu.concatenate %24, %25, %26, %27, %28, %29, %30, %31, %32 in 1 : vector<16x64xf32>, vector<16x64xf32>, vector<16x64xf32>, vector<16x64xf32>, vector<16x64xf32>, vector<16x64xf32>, vector<16x64xf32>, vector<16x64xf32>, vector<16x64xf32> -> vector<16x576xf32>
    %34 = tpu.concatenate %21, %33 in 0 : vector<16x576xf32>, vector<16x576xf32> -> vector<32x576xf32>
    %35 = arith.truncf %34 : vector<32x576xf32> to vector<32x576xbf16>
    %c0_10 = arith.constant 0 : index
    %c0_11 = arith.constant 0 : index
    %36 = vector.load %arg5[%c0_10, %c0_11] : memref<576x64xbf16, #tpu.memory_space<vmem>>, vector<576x64xbf16>
    %cst_12 = arith.constant dense<0.000000e+00> : vector<32x64xf32>
    %37 = tpu.matmul %35, %36, %cst_12 {dimension_numbers = #tpu.dot_dimension_numbers<[1], [0], [0], [1], [0, 0, 1, 1], [], []>} : vector<32x576xbf16>, vector<576x64xbf16>, vector<32x64xf32> -> vector<32x64xf32>
    %c0_13 = arith.constant 0 : index
    %c0_14 = arith.constant 0 : index
    %38 = vector.load %arg8[%c0_13, %c0_14] : memref<1x64xf32, #tpu.memory_space<vmem>>, vector<1x64xf32>
    %39 = vector.broadcast %38 : vector<1x64xf32> to vector<32x64xf32>
    %40 = arith.addf %37, %39 : vector<32x64xf32>
    %cst_15 = arith.constant 0.000000e+00 : f32
    %41 = vector.broadcast %cst_15 : f32 to vector<32x64xf32>
    %42 = arith.maximumf %40, %41 : vector<32x64xf32>
    %43 = arith.truncf %42 : vector<32x64xf32> to vector<32x64xbf16>
    %c0_16 = arith.constant 0 : index
    %c0_17 = arith.constant 0 : index
    %44 = vector.load %arg3[%c0_16, %c0_17] : memref<72x16xbf16, #tpu.memory_space<vmem>>, vector<72x16xbf16>
    %45 = vector.extract_strided_slice %43 {offsets = [0, 0], sizes = [16, 64], strides = [1, 1]} : vector<32x64xbf16> to vector<16x64xbf16>
    %cst_18 = arith.constant dense<0.000000e+00> : vector<72x64xf32>
    %46 = tpu.matmul %44, %45, %cst_18 {dimension_numbers = #tpu.dot_dimension_numbers<[1], [0], [0], [1], [0, 0, 1, 1], [], []>} : vector<72x16xbf16>, vector<16x64xbf16>, vector<72x64xf32> -> vector<72x64xf32>
    %47 = vector.extract_strided_slice %46 {offsets = [0, 0], sizes = [8, 64], strides = [1, 1]} : vector<72x64xf32> to vector<8x64xf32>
    %48 = vector.extract_strided_slice %46 {offsets = [8, 0], sizes = [8, 64], strides = [1, 1]} : vector<72x64xf32> to vector<8x64xf32>
    %49 = vector.extract_strided_slice %46 {offsets = [16, 0], sizes = [8, 64], strides = [1, 1]} : vector<72x64xf32> to vector<8x64xf32>
    %50 = vector.extract_strided_slice %46 {offsets = [24, 0], sizes = [8, 64], strides = [1, 1]} : vector<72x64xf32> to vector<8x64xf32>
    %51 = vector.extract_strided_slice %46 {offsets = [32, 0], sizes = [8, 64], strides = [1, 1]} : vector<72x64xf32> to vector<8x64xf32>
    %52 = vector.extract_strided_slice %46 {offsets = [40, 0], sizes = [8, 64], strides = [1, 1]} : vector<72x64xf32> to vector<8x64xf32>
    %53 = vector.extract_strided_slice %46 {offsets = [48, 0], sizes = [8, 64], strides = [1, 1]} : vector<72x64xf32> to vector<8x64xf32>
    %54 = vector.extract_strided_slice %46 {offsets = [56, 0], sizes = [8, 64], strides = [1, 1]} : vector<72x64xf32> to vector<8x64xf32>
    %55 = vector.extract_strided_slice %46 {offsets = [64, 0], sizes = [8, 64], strides = [1, 1]} : vector<72x64xf32> to vector<8x64xf32>
    %56 = tpu.concatenate %47, %48, %49, %50, %51, %52, %53, %54, %55 in 1 : vector<8x64xf32>, vector<8x64xf32>, vector<8x64xf32>, vector<8x64xf32>, vector<8x64xf32>, vector<8x64xf32>, vector<8x64xf32>, vector<8x64xf32>, vector<8x64xf32> -> vector<8x576xf32>
    %57 = vector.extract_strided_slice %43 {offsets = [16, 0], sizes = [16, 64], strides = [1, 1]} : vector<32x64xbf16> to vector<16x64xbf16>
    %cst_19 = arith.constant dense<0.000000e+00> : vector<72x64xf32>
    %58 = tpu.matmul %44, %57, %cst_19 {dimension_numbers = #tpu.dot_dimension_numbers<[1], [0], [0], [1], [0, 0, 1, 1], [], []>} : vector<72x16xbf16>, vector<16x64xbf16>, vector<72x64xf32> -> vector<72x64xf32>
    %59 = vector.extract_strided_slice %58 {offsets = [0, 0], sizes = [8, 64], strides = [1, 1]} : vector<72x64xf32> to vector<8x64xf32>
    %60 = vector.extract_strided_slice %58 {offsets = [8, 0], sizes = [8, 64], strides = [1, 1]} : vector<72x64xf32> to vector<8x64xf32>
    %61 = vector.extract_strided_slice %58 {offsets = [16, 0], sizes = [8, 64], strides = [1, 1]} : vector<72x64xf32> to vector<8x64xf32>
    %62 = vector.extract_strided_slice %58 {offsets = [24, 0], sizes = [8, 64], strides = [1, 1]} : vector<72x64xf32> to vector<8x64xf32>
    %63 = vector.extract_strided_slice %58 {offsets = [32, 0], sizes = [8, 64], strides = [1, 1]} : vector<72x64xf32> to vector<8x64xf32>
    %64 = vector.extract_strided_slice %58 {offsets = [40, 0], sizes = [8, 64], strides = [1, 1]} : vector<72x64xf32> to vector<8x64xf32>
    %65 = vector.extract_strided_slice %58 {offsets = [48, 0], sizes = [8, 64], strides = [1, 1]} : vector<72x64xf32> to vector<8x64xf32>
    %66 = vector.extract_strided_slice %58 {offsets = [56, 0], sizes = [8, 64], strides = [1, 1]} : vector<72x64xf32> to vector<8x64xf32>
    %67 = vector.extract_strided_slice %58 {offsets = [64, 0], sizes = [8, 64], strides = [1, 1]} : vector<72x64xf32> to vector<8x64xf32>
    %68 = tpu.concatenate %59, %60, %61, %62, %63, %64, %65, %66, %67 in 1 : vector<8x64xf32>, vector<8x64xf32>, vector<8x64xf32>, vector<8x64xf32>, vector<8x64xf32>, vector<8x64xf32>, vector<8x64xf32>, vector<8x64xf32>, vector<8x64xf32> -> vector<8x576xf32>
    %69 = tpu.concatenate %56, %68 in 0 : vector<8x576xf32>, vector<8x576xf32> -> vector<16x576xf32>
    %70 = arith.truncf %69 : vector<16x576xf32> to vector<16x576xbf16>
    %c0_20 = arith.constant 0 : index
    %c0_21 = arith.constant 0 : index
    %71 = vector.load %arg6[%c0_20, %c0_21] : memref<576x32xbf16, #tpu.memory_space<vmem>>, vector<576x32xbf16>
    %cst_22 = arith.constant dense<0.000000e+00> : vector<16x32xf32>
    %72 = tpu.matmul %70, %71, %cst_22 {dimension_numbers = #tpu.dot_dimension_numbers<[1], [0], [0], [1], [0, 0, 1, 1], [], []>} : vector<16x576xbf16>, vector<576x32xbf16>, vector<16x32xf32> -> vector<16x32xf32>
    %c0_23 = arith.constant 0 : index
    %c0_24 = arith.constant 0 : index
    %73 = vector.load %arg9[%c0_23, %c0_24] : memref<1x32xf32, #tpu.memory_space<vmem>>, vector<1x32xf32>
    %74 = vector.broadcast %73 : vector<1x32xf32> to vector<16x32xf32>
    %75 = arith.addf %72, %74 : vector<16x32xf32>
    %cst_25 = arith.constant 0.000000e+00 : f32
    %76 = vector.broadcast %cst_25 : f32 to vector<16x32xf32>
    %77 = arith.maximumf %75, %76 : vector<16x32xf32>
    %c0_26 = arith.constant 0 : index
    %c0_27 = arith.constant 0 : index
    %78 = vector.load %arg10[%c0_26, %c0_27] : memref<16x32xf32, #tpu.memory_space<vmem>>, vector<16x32xf32>
    tpu.vector_store %arg10[%c0_26, %c0_27], %77 {strides = array<i32>} : memref<16x32xf32, #tpu.memory_space<vmem>>, vector<16x32xf32>,
    return
  }
  func.func @transform_0(%arg0: i32) -> (i32, i32) {
    %c0_i32 = arith.constant 0 : i32
    %c0_i32_0 = arith.constant 0 : i32
    return %arg0, %c0_i32 : i32, i32
  }
  func.func @transform_1(%arg0: i32) -> (i32, i32) {
    %c0_i32 = arith.constant 0 : i32
    %c0_i32_0 = arith.constant 0 : i32
    %c0_i32_1 = arith.constant 0 : i32
    return %c0_i32, %c0_i32_0 : i32, i32
  }
  func.func @transform_2(%arg0: i32) -> (i32, i32) {
    %c0_i32 = arith.constant 0 : i32
    %c0_i32_0 = arith.constant 0 : i32
    %c0_i32_1 = arith.constant 0 : i32
    return %c0_i32, %c0_i32_0 : i32, i32
  }
  func.func @transform_3(%arg0: i32) -> (i32, i32) {
    %c0_i32 = arith.constant 0 : i32
    %c0_i32_0 = arith.constant 0 : i32
    %c0_i32_1 = arith.constant 0 : i32
    return %c0_i32, %c0_i32_0 : i32, i32
  }
  func.func @transform_4(%arg0: i32) -> (i32, i32) {
    %c0_i32 = arith.constant 0 : i32
    %c0_i32_0 = arith.constant 0 : i32
    %c0_i32_1 = arith.constant 0 : i32
    return %c0_i32, %c0_i32_0 : i32, i32
  }
  func.func @transform_5(%arg0: i32) -> (i32, i32) {
    %c0_i32 = arith.constant 0 : i32
    %c0_i32_0 = arith.constant 0 : i32
    %c0_i32_1 = arith.constant 0 : i32
    return %c0_i32, %c0_i32_0 : i32, i32
  }
  func.func @transform_6(%arg0: i32) -> (i32, i32) {
    %c0_i32 = arith.constant 0 : i32
    %c0_i32_0 = arith.constant 0 : i32
    %c0_i32_1 = arith.constant 0 : i32
    return %c0_i32, %c0_i32_0 : i32, i32
  }
  func.func @transform_7(%arg0: i32) -> (i32, i32) {
    %c0_i32 = arith.constant 0 : i32
    %c0_i32_0 = arith.constant 0 : i32
    %c0_i32_1 = arith.constant 0 : i32
    return %c0_i32, %c0_i32_0 : i32, i32
  }
  func.func @transform_8(%arg0: i32) -> (i32, i32) {
    %c0_i32 = arith.constant 0 : i32
    %c0_i32_0 = arith.constant 0 : i32
    %c0_i32_1 = arith.constant 0 : i32
    return %c0_i32, %c0_i32_0 : i32, i32
  }
  func.func @transform_9(%arg0: i32) -> (i32, i32) {
    %c0_i32 = arith.constant 0 : i32
    %c0_i32_0 = arith.constant 0 : i32
    return %arg0, %c0_i32 : i32, i32
  }
}

</mosaic_0001>

<llo_original>
// kernel: encoder_forward.1
$region0: #{encoder_forward.1}
  #allocation0 [shape = 'u32[]', space=smem, size = 0x4, offset = 0x4, fixed_abs, tag = 'smem constant byte address 0x4 - core index']
  #allocation1 [shape = 'u32[144,128]{1,0:T(1,128)}', space=vmem, size = 0x12000, scoped, tag = 'internal scratch']
  %s0 = inlined_call_operand.vmem [shape: bf16[128,36], index: 0, kind: input, shape index: {}]
  %s1 = inlined_call_operand.vmem [shape: bf16[144,64], index: 1, kind: input, shape index: {}]
  %s2 = inlined_call_operand.vmem [shape: bf16[72,16], index: 2, kind: input, shape index: {}]
  %s3 = inlined_call_operand.vmem [shape: bf16[36,64], index: 3, kind: input, shape index: {}]
  %s4 = inlined_call_operand.vmem [shape: bf16[576,64], index: 4, kind: input, shape index: {}]
  %s5 = inlined_call_operand.vmem [shape: bf16[576,32], index: 5, kind: input, shape index: {}]
  %s6 = inlined_call_operand.vmem [shape: f32[1,64], index: 6, kind: input, shape index: {}]
  %s7 = inlined_call_operand.vmem [shape: f32[1,64], index: 7, kind: input, shape index: {}]
  %s8 = inlined_call_operand.vmem [shape: f32[1,32], index: 8, kind: input, shape index: {}]
  %s9 = inlined_call_operand.vmem [shape: f32[16,32], index: 9, kind: output, shape index: {}]
  %s10 = sld [smem:[#allocation0]]
  $region46: #{encoder_forward.1} parent=0
    _
  %s12 = ssub.s32 1, %s10
  %s13 = scalar_select 0, %s12, %s10
  // Predicated region
  $region2: #{encoder_forward.1} parent=0 // pred_check
    _
  $region3: #{encoder_forward.1} parent=0 // pred_check_branch
    %15 = sbr.rel (0) target = $region5
  $region4: #{encoder_forward.1} parent=0 // pred_region
    _
  $region5: #{encoder_forward.1} parent=0 // pred_fallthru
    _
  // Predicated region
  $region6: #{encoder_forward.1} parent=0 // pred_check
    _
  $region7: #{encoder_forward.1} parent=0 // pred_check_branch
    %17 = sbr.rel (0) target = $region9
  $region8: #{encoder_forward.1} parent=0 // pred_region
    _
  $region9: #{encoder_forward.1} parent=0 // pred_fallthru
    _
  // Predicated region
  $region10: #{encoder_forward.1} parent=0 // pred_check
    _
  $region11: #{encoder_forward.1} parent=0 // pred_check_branch
    %19 = sbr.rel (0) target = $region13
  $region12: #{encoder_forward.1} parent=0 // pred_region
    _
  $region13: #{encoder_forward.1} parent=0 // pred_fallthru
    _
  // Predicated region
  $region14: #{encoder_forward.1} parent=0 // pred_check
    _
  $region15: #{encoder_forward.1} parent=0 // pred_check_branch
    %21 = sbr.rel (0) target = $region17
  $region16: #{encoder_forward.1} parent=0 // pred_region
    _
  $region17: #{encoder_forward.1} parent=0 // pred_fallthru
    _
  // Predicated region
  $region18: #{encoder_forward.1} parent=0 // pred_check
    _
  $region19: #{encoder_forward.1} parent=0 // pred_check_branch
    %23 = sbr.rel (0) target = $region21
  $region20: #{encoder_forward.1} parent=0 // pred_region
    _
  $region21: #{encoder_forward.1} parent=0 // pred_fallthru
    _
  // Predicated region
  $region22: #{encoder_forward.1} parent=0 // pred_check
    _
  $region23: #{encoder_forward.1} parent=0 // pred_check_branch
    %25 = sbr.rel (0) target = $region25
  $region24: #{encoder_forward.1} parent=0 // pred_region
    _
  $region25: #{encoder_forward.1} parent=0 // pred_fallthru
    _
  // Predicated region
  $region26: #{encoder_forward.1} parent=0 // pred_check
    _
  $region27: #{encoder_forward.1} parent=0 // pred_check_branch
    %27 = sbr.rel (0) target = $region29
  $region28: #{encoder_forward.1} parent=0 // pred_region
    _
  $region29: #{encoder_forward.1} parent=0 // pred_fallthru
    _
  // Predicated region
  $region30: #{encoder_forward.1} parent=0 // pred_check
    _
  $region31: #{encoder_forward.1} parent=0 // pred_check_branch
    %29 = sbr.rel (0) target = $region33
  $region32: #{encoder_forward.1} parent=0 // pred_region
    _
  $region33: #{encoder_forward.1} parent=0 // pred_fallthru
    _
  // Predicated region
  $region34: #{encoder_forward.1} parent=0 // pred_check
    _
  $region35: #{encoder_forward.1} parent=0 // pred_check_branch
    %31 = sbr.rel (0) target = $region37
  $region36: #{encoder_forward.1} parent=0 // pred_region
    _
  $region37: #{encoder_forward.1} parent=0 // pred_fallthru
    _
  %v33 = vld [vmem:[%s0] sm:$0xf]
  %v34 = vld [vmem:[%s0 + $0x4] sm:$0xf]
  %v35 = vld [vmem:[%s0 + $0x8] sm:$0xf]
  %v36 = vld [vmem:[%s0 + $0xc] sm:$0xf]
  %v37 = vld [vmem:[%s0 + $0x10] sm:$0xf]
  %v38 = vld [vmem:[%s0 + $0x14] sm:$0xf]
  %v39 = vld [vmem:[%s0 + $0x18] sm:$0xf]
  %v40 = vld [vmem:[%s0 + $0x1c] sm:$0xf]
  %v41 = vld [vmem:[%s0 + $0x20] sm:$0xf]
  %v42 = vld [vmem:[%s0 + $0x24] sm:$0xf]
  %v43 = vld [vmem:[%s0 + $0x28] sm:$0xf]
  %v44 = vld [vmem:[%s0 + $0x2c] sm:$0xf]
  %v45 = vld [vmem:[%s0 + $0x30] sm:$0xf]
  %v46 = vld [vmem:[%s0 + $0x34] sm:$0xf]
  %v47 = vld [vmem:[%s0 + $0x38] sm:$0xf]
  %v48 = vld [vmem:[%s0 + $0x3c] sm:$0xf]
  %v49 = vld [vmem:[%s3] sm:$0xf]
  %v50 = vld [vmem:[%s3 + $0x4] sm:$0xf]
  %v51 = vld [vmem:[%s3 + $0x8] sm:$0xf]
  %v52 = vld [vmem:[%s3 + $0xc] sm:$0xf]
  %v53 = vld [vmem:[%s3 + $0x10] sm:$0x3]
  %v54 = vld [vmem:[%s6] sm:$0x1]
  %v56 = vlaneseq
  %v57 = vshrl.u32 %v56, 7
  %v58 = vsub.s32 0, %v57
  %v59 = vrot.slane %v54, %v58
  %v77 = vunpack.c.l.b16 %v33
  %v78 = vunpack.c.l.b16 %v34
  %v79 = vunpack.c.l.b16 %v35
  %v80 = vunpack.c.l.b16 %v36
  %v81 = vunpack.c.l.b16 %v37
  %v82 = vunpack.c.l.b16 %v38
  %v83 = vunpack.c.l.b16 %v39
  %v84 = vunpack.c.l.b16 %v40
  %v85 = vunpack.c.l.b16 %v41
  %v86 = vunpack.c.l.b16 %v42
  %v87 = vunpack.c.l.b16 %v43
  %v88 = vunpack.c.l.b16 %v44
  %v89 = vunpack.c.l.b16 %v45
  %v90 = vunpack.c.l.b16 %v46
  %v91 = vunpack.c.l.b16 %v47
  %v92 = vunpack.c.l.b16 %v48
  %v93 = vpack.c.b16 %v78, %v77
  %v94 = vpack.c.b16 %v80, %v79
  %v95 = vpack.c.b16 %v82, %v81
  %v96 = vpack.c.b16 %v84, %v83
  %v97 = vpack.c.b16 %v86, %v85
  %v98 = vpack.c.b16 %v88, %v87
  %v99 = vpack.c.b16 %v90, %v89
  %v100 = vpack.c.b16 %v92, %v91
  %v106 = vunpack.c.l.b16 %v49
  %v107 = vunpack.c.l.b16 %v50
  %v108 = vunpack.c.l.b16 %v51
  %v109 = vunpack.c.l.b16 %v52
  %v110 = vunpack.c.l.b16 %v53
  %v111 = vpack.c.b16 %v107, %v106
  %v112 = vpack.c.b16 %v109, %v108
  %v113 = vpack.c.b16 %v110, %v110
  %vm116 = vcmask 293888
  %v118 = vsel %vm116, %v93, 0
  %v121 = vsel %vm116, %v94, 0
  %v124 = vsel %vm116, %v95, 0
  %v127 = vsel %vm116, %v96, 0
  %v130 = vsel %vm116, %v97, 0
  %v133 = vsel %vm116, %v98, 0
  %v136 = vsel %vm116, %v99, 0
  %v139 = vsel %vm116, %v100, 0
  %vm141 = vcmask 1041408
  %v143 = vsel %vm141, %v113, 0
  %145 = vmatprep.subr.bf16.mxu0 0
  %146 = vmatpush1.bf16.msra.mxu0 %v111
  %147 = vmatprep.subr.bf16.mxu0 0
  %148 = vmatpush1.bf16.msra.mxu0 %v112
  %149 = vmatprep.subr.bf16.mxu0 0
  %150 = vmatpush1.bf16.msra.mxu0 %v143
  %151 = vmatprep.subr.bf16.mxu0 0
  %152 = vmatpush1.bf16.msra.mxu0 0
  %153 = vmatprep.subr.bf16.mxu0 0
  %154 = vmatpush1.bf16.msra.mxu0 0
  %155 = vmatprep.subr.bf16.mxu0 0
  %156 = vmatpush1.bf16.msra.mxu0 0
  %157 = vmatprep.subr.bf16.mxu0 0
  %158 = vmatpush1.bf16.msra.mxu0 0
  %159 = vmatprep.subr.bf16.mxu0 0
  %160 = vmatpush1.bf16.msra.mxu0 0
  %161 = vmatprep.subr.bf16.mxu0 0
  %162 = vmatpush1.bf16.msra.mxu0 0
  %163 = vmatprep.subr.bf16.mxu0 0
  %164 = vmatpush1.bf16.msra.mxu0 0
  %165 = vmatprep.subr.bf16.mxu0 0
  %166 = vmatpush1.bf16.msra.mxu0 0
  %167 = vmatprep.subr.bf16.mxu0 0
  %168 = vmatpush1.bf16.msra.mxu0 0
  %169 = vmatprep.subr.bf16.mxu0 0
  %170 = vmatpush1.bf16.msra.mxu0 0
  %171 = vmatprep.subr.bf16.mxu0 0
  %172 = vmatpush1.bf16.msra.mxu0 0
  %173 = vmatprep.subr.bf16.mxu0 0
  %174 = vmatpush1.bf16.msra.mxu0 0
  %175 = vmatprep.subr.bf16.mxu0 0
  %176 = vmatpush1.bf16.msra.mxu0 0
  %177 = vmatprep.mubr.bf16.mxu0 0
  %178 = vmatmul.mubr.bf16.gmra.mrb[0].mxu0 %v118
  %v179 = vpop.f32.mrb[0].mxu0
  %v180 = vadd.f32 %v59, %v179
  %v181 = vpop.f32.mrb[0].mxu0
  %v182 = vpop.f32.mrb[0].mxu0
  %v183 = vadd.f32 %v59, %v182
  %v184 = vpop.f32.mrb[0].mxu0
  %185 = vmatprep.mubr.bf16.mxu0 0
  %186 = vmatmul.mubr.bf16.gmra.mrb[0].mxu0 %v121
  %v187 = vpop.f32.mrb[0].mxu0
  %v188 = vadd.f32 %v59, %v187
  %v189 = vpop.f32.mrb[0].mxu0
  %v190 = vpop.f32.mrb[0].mxu0
  %v191 = vadd.f32 %v59, %v190
  %v192 = vpop.f32.mrb[0].mxu0
  %193 = vmatprep.mubr.bf16.mxu0 0
  %194 = vmatmul.mubr.bf16.gmra.mrb[0].mxu0 %v124
  %v195 = vpop.f32.mrb[0].mxu0
  %v196 = vadd.f32 %v59, %v195
  %v197 = vpop.f32.mrb[0].mxu0
  %v198 = vpop.f32.mrb[0].mxu0
  %v199 = vadd.f32 %v59, %v198
  %v200 = vpop.f32.mrb[0].mxu0
  %201 = vmatprep.mubr.bf16.mxu0 0
  %202 = vmatmul.mubr.bf16.gmra.mrb[0].mxu0 %v127
  %v203 = vpop.f32.mrb[0].mxu0
  %v204 = vadd.f32 %v59, %v203
  %v205 = vpop.f32.mrb[0].mxu0
  %v206 = vpop.f32.mrb[0].mxu0
  %v207 = vadd.f32 %v59, %v206
  %v208 = vpop.f32.mrb[0].mxu0
  %209 = vmatprep.mubr.bf16.mxu0 0
  %210 = vmatmul.mubr.bf16.gmra.mrb[0].mxu0 %v130
  %v211 = vpop.f32.mrb[0].mxu0
  %v212 = vadd.f32 %v59, %v211
  %v213 = vpop.f32.mrb[0].mxu0
  %v214 = vpop.f32.mrb[0].mxu0
  %v215 = vadd.f32 %v59, %v214
  %v216 = vpop.f32.mrb[0].mxu0
  %217 = vmatprep.mubr.bf16.mxu0 0
  %218 = vmatmul.mubr.bf16.gmra.mrb[0].mxu0 %v133
  %v219 = vpop.f32.mrb[0].mxu0
  %v220 = vadd.f32 %v59, %v219
  %v221 = vpop.f32.mrb[0].mxu0
  %v222 = vpop.f32.mrb[0].mxu0
  %v223 = vadd.f32 %v59, %v222
  %v224 = vpop.f32.mrb[0].mxu0
  %225 = vmatprep.mubr.bf16.mxu0 0
  %226 = vmatmul.mubr.bf16.gmra.mrb[0].mxu0 %v136
  %v227 = vpop.f32.mrb[0].mxu0
  %v228 = vadd.f32 %v59, %v227
  %v229 = vpop.f32.mrb[0].mxu0
  %v230 = vpop.f32.mrb[0].mxu0
  %v231 = vadd.f32 %v59, %v230
  %v232 = vpop.f32.mrb[0].mxu0
  %233 = vmatprep.mubr.bf16.mxu0 0
  %234 = vmatmul.mubr.bf16.gmra.mrb[0].mxu0 %v139
  %v235 = vpop.f32.mrb[0].mxu0
  %v236 = vadd.f32 %v59, %v235
  %v237 = vpop.f32.mrb[0].mxu0
  %v238 = vpop.f32.mrb[0].mxu0
  %v239 = vadd.f32 %v59, %v238
  %v240 = vpop.f32.mrb[0].mxu0
  %241 = vdwg.mxu0
  %v242 = vmax.f32 %v180, 0.0
  %v243 = vmax.f32 %v183, 0.0
  %v244 = vmax.f32 %v188, 0.0
  %v245 = vmax.f32 %v191, 0.0
  %v246 = vmax.f32 %v196, 0.0
  %v247 = vmax.f32 %v199, 0.0
  %v248 = vmax.f32 %v204, 0.0
  %v249 = vmax.f32 %v207, 0.0
  %v250 = vmax.f32 %v212, 0.0
  %v251 = vmax.f32 %v215, 0.0
  %v252 = vmax.f32 %v220, 0.0
  %v253 = vmax.f32 %v223, 0.0
  %v254 = vmax.f32 %v228, 0.0
  %v255 = vmax.f32 %v231, 0.0
  %v256 = vmax.f32 %v236, 0.0
  %v257 = vmax.f32 %v239, 0.0
  %v258 = vpack.c.bf16 %v243, %v242
  %v259 = vpack.c.bf16 %v245, %v244
  %v260 = vpack.c.bf16 %v247, %v246
  %v261 = vpack.c.bf16 %v249, %v248
  %v262 = vpack.c.bf16 %v251, %v250
  %v263 = vpack.c.bf16 %v253, %v252
  %v264 = vpack.c.bf16 %v255, %v254
  %v265 = vpack.c.bf16 %v257, %v256
  %v266 = vld [vmem:[%s1] sm:$0xf]
  %v267 = vld [vmem:[%s1 + $0x4] sm:$0xf]
  %v268 = vld [vmem:[%s1 + $0x8] sm:$0xf]
  %v269 = vld [vmem:[%s1 + $0xc] sm:$0xf]
  %v270 = vld [vmem:[%s1 + $0x10] sm:$0xf]
  %v271 = vld [vmem:[%s1 + $0x14] sm:$0xf]
  %v272 = vld [vmem:[%s1 + $0x18] sm:$0xf]
  %v273 = vld [vmem:[%s1 + $0x1c] sm:$0xf]
  %v274 = vld [vmem:[%s1 + $0x20] sm:$0xf]
  %v275 = vld [vmem:[%s1 + $0x24] sm:$0xf]
  %v276 = vld [vmem:[%s1 + $0x28] sm:$0xf]
  %v277 = vld [vmem:[%s1 + $0x2c] sm:$0xf]
  %v278 = vld [vmem:[%s1 + $0x30] sm:$0xf]
  %v279 = vld [vmem:[%s1 + $0x34] sm:$0xf]
  %v280 = vld [vmem:[%s1 + $0x38] sm:$0xf]
  %v281 = vld [vmem:[%s1 + $0x3c] sm:$0xf]
  %v282 = vld [vmem:[%s1 + $0x40] sm:$0xf]
  %v283 = vld [vmem:[%s1 + $0x44] sm:$0xf]
  %v302 = vunpack.c.l.b16 %v266
  %v303 = vunpack.c.l.b16 %v267
  %v304 = vunpack.c.l.b16 %v268
  %v305 = vunpack.c.l.b16 %v269
  %v306 = vunpack.c.l.b16 %v270
  %v307 = vunpack.c.l.b16 %v271
  %v308 = vunpack.c.l.b16 %v272
  %v309 = vunpack.c.l.b16 %v273
  %v310 = vunpack.c.l.b16 %v274
  %v311 = vunpack.c.l.b16 %v275
  %v312 = vunpack.c.l.b16 %v276
  %v313 = vunpack.c.l.b16 %v277
  %v314 = vunpack.c.l.b16 %v278
  %v315 = vunpack.c.l.b16 %v279
  %v316 = vunpack.c.l.b16 %v280
  %v317 = vunpack.c.l.b16 %v281
  %v318 = vunpack.c.l.b16 %v282
  %v319 = vunpack.c.l.b16 %v283
  %v320 = vpack.c.b16 %v303, %v302
  %v321 = vpack.c.b16 %v305, %v304
  %v322 = vpack.c.b16 %v307, %v306
  %v323 = vpack.c.b16 %v309, %v308
  %v324 = vpack.c.b16 %v311, %v310
  %v325 = vpack.c.b16 %v313, %v312
  %v326 = vpack.c.b16 %v315, %v314
  %v327 = vpack.c.b16 %v317, %v316
  %v328 = vpack.c.b16 %v319, %v318
  %vm329 = vcmask 523264
  %v331 = vsel %vm329, %v320, 0
  %v334 = vsel %vm329, %v321, 0
  %v337 = vsel %vm329, %v322, 0
  %v340 = vsel %vm329, %v323, 0
  %v343 = vsel %vm329, %v324, 0
  %v346 = vsel %vm329, %v325, 0
  %v349 = vsel %vm329, %v326, 0
  %v352 = vsel %vm329, %v327, 0
  %v355 = vsel %vm329, %v328, 0
  %357 = vmatprep.subr.bf16.mxu0 0
  %358 = vmatpush1.bf16.msra.mxu0 %v258
  %359 = vmatprep.subr.bf16.mxu0 0
  %360 = vmatpush1.bf16.msra.mxu0 %v259
  %361 = vmatprep.subr.bf16.mxu0 0
  %362 = vmatpush1.bf16.msra.mxu0 %v260
  %363 = vmatprep.subr.bf16.mxu0 0
  %364 = vmatpush1.bf16.msra.mxu0 %v261
  %365 = vmatprep.subr.bf16.mxu0 0
  %366 = vmatpush1.bf16.msra.mxu0 0
  %367 = vmatprep.subr.bf16.mxu0 0
  %368 = vmatpush1.bf16.msra.mxu0 0
  %369 = vmatprep.subr.bf16.mxu0 0
  %370 = vmatpush1.bf16.msra.mxu0 0
  %371 = vmatprep.subr.bf16.mxu0 0
  %372 = vmatpush1.bf16.msra.mxu0 0
  %373 = vmatprep.subr.bf16.mxu0 0
  %374 = vmatpush1.bf16.msra.mxu0 0
  %375 = vmatprep.subr.bf16.mxu0 0
  %376 = vmatpush1.bf16.msra.mxu0 0
  %377 = vmatprep.subr.bf16.mxu0 0
  %378 = vmatpush1.bf16.msra.mxu0 0
  %379 = vmatprep.subr.bf16.mxu0 0
  %380 = vmatpush1.bf16.msra.mxu0 0
  %381 = vmatprep.subr.bf16.mxu0 0
  %382 = vmatpush1.bf16.msra.mxu0 0
  %383 = vmatprep.subr.bf16.mxu0 0
  %384 = vmatpush1.bf16.msra.mxu0 0
  %385 = vmatprep.subr.bf16.mxu0 0
  %386 = vmatpush1.bf16.msra.mxu0 0
  %387 = vmatprep.subr.bf16.mxu0 0
  %388 = vmatpush1.bf16.msra.mxu0 0
  %389 = vmatprep.mubr.bf16.mxu0 0
  %390 = vmatmul.mubr.bf16.gmra.mrb[0].mxu0 %v331
  %v391 = vpop.f32.mrb[0].mxu0
  %v392 = vadd.f32 0.0, %v391
  %v393 = vpop.f32.mrb[0].mxu0
  %v394 = vpop.f32.mrb[0].mxu0
  %v395 = vadd.f32 0.0, %v394
  %v396 = vpop.f32.mrb[0].mxu0
  %397 = vmatprep.mubr.bf16.mxu0 0
  %398 = vmatmul.mubr.bf16.gmra.mrb[0].mxu0 %v334
  %v399 = vpop.f32.mrb[0].mxu0
  %v400 = vadd.f32 0.0, %v399
  %v401 = vpop.f32.mrb[0].mxu0
  %v402 = vpop.f32.mrb[0].mxu0
  %v403 = vadd.f32 0.0, %v402
  %v404 = vpop.f32.mrb[0].mxu0
  %405 = vmatprep.mubr.bf16.mxu0 0
  %406 = vmatmul.mubr.bf16.gmra.mrb[0].mxu0 %v337
  %v407 = vpop.f32.mrb[0].mxu0
  %v408 = vadd.f32 0.0, %v407
  %v409 = vpop.f32.mrb[0].mxu0
  %v410 = vpop.f32.mrb[0].mxu0
  %v411 = vadd.f32 0.0, %v410
  %v412 = vpop.f32.mrb[0].mxu0
  %413 = vmatprep.mubr.bf16.mxu0 0
  %414 = vmatmul.mubr.bf16.gmra.mrb[0].mxu0 %v340
  %v415 = vpop.f32.mrb[0].mxu0
  %v416 = vadd.f32 0.0, %v415
  %v417 = vpop.f32.mrb[0].mxu0
  %v418 = vpop.f32.mrb[0].mxu0
  %v419 = vadd.f32 0.0, %v418
  %v420 = vpop.f32.mrb[0].mxu0
  %421 = vmatprep.mubr.bf16.mxu0 0
  %422 = vmatmul.mubr.bf16.gmra.mrb[0].mxu0 %v343
  %v423 = vpop.f32.mrb[0].mxu0
  %v424 = vadd.f32 0.0, %v423
  %v425 = vpop.f32.mrb[0].mxu0
  %v426 = vpop.f32.mrb[0].mxu0
  %v427 = vadd.f32 0.0, %v426
  %v428 = vpop.f32.mrb[0].mxu0
  %429 = vmatprep.mubr.bf16.mxu0 0
  %430 = vmatmul.mubr.bf16.gmra.mrb[0].mxu0 %v346
  %v431 = vpop.f32.mrb[0].mxu0
  %v432 = vadd.f32 0.0, %v431
  %v433 = vpop.f32.mrb[0].mxu0
  %v434 = vpop.f32.mrb[0].mxu0
  %v435 = vadd.f32 0.0, %v434
  %v436 = vpop.f32.mrb[0].mxu0
  %437 = vmatprep.mubr.bf16.mxu0 0
  %438 = vmatmul.mubr.bf16.gmra.mrb[0].mxu0 %v349
  %v439 = vpop.f32.mrb[0].mxu0
  %v440 = vadd.f32 0.0, %v439
  %v441 = vpop.f32.mrb[0].mxu0
  %v442 = vpop.f32.mrb[0].mxu0
  %v443 = vadd.f32 0.0, %v442
  %v444 = vpop.f32.mrb[0].mxu0
  %445 = vmatprep.mubr.bf16.mxu0 0
  %446 = vmatmul.mubr.bf16.gmra.mrb[0].mxu0 %v352
  %v447 = vpop.f32.mrb[0].mxu0
  %v448 = vadd.f32 0.0, %v447
  %v449 = vpop.f32.mrb[0].mxu0
  %v450 = vpop.f32.mrb[0].mxu0
  %v451 = vadd.f32 0.0, %v450
  %v452 = vpop.f32.mrb[0].mxu0
  %453 = vmatprep.mubr.bf16.mxu0 0
  %454 = vmatmul.mubr.bf16.gmra.mrb[0].mxu0 %v355
  %v455 = vpop.f32.mrb[0].mxu0
  %v456 = vadd.f32 0.0, %v455
  %v457 = vpop.f32.mrb[0].mxu0
  %v458 = vpop.f32.mrb[0].mxu0
  %v459 = vadd.f32 0.0, %v458
  %v460 = vpop.f32.mrb[0].mxu0
  %461 = vdwg.mxu0
  %464 = vrot.lane.b32.xlu0 %v400, 64
  %v465 = vpop.permute.xlu0 %464
  %466 = vrot.lane.b32.xlu0 %v403, 64
  %v467 = vpop.permute.xlu0 %466
  %472 = vrot.lane.b32.xlu0 %v416, 64
  %v473 = vpop.permute.xlu0 %472
  %474 = vrot.lane.b32.xlu0 %v419, 64
  %v475 = vpop.permute.xlu0 %474
  %480 = vrot.lane.b32.xlu0 %v432, 64
  %v481 = vpop.permute.xlu0 %480
  %482 = vrot.lane.b32.xlu0 %v435, 64
  %v483 = vpop.permute.xlu0 %482
  %488 = vrot.lane.b32.xlu0 %v448, 64
  %v489 = vpop.permute.xlu0 %488
  %490 = vrot.lane.b32.xlu0 %v451, 64
  %v491 = vpop.permute.xlu0 %490
  %v494 = vsel %vm329, %v392, %v465
  %v495 = vsel %vm329, %v395, %v467
  %v496 = vsel %vm329, %v408, %v473
  %v497 = vsel %vm329, %v411, %v475
  %v498 = vsel %vm329, %v424, %v481
  %v499 = vsel %vm329, %v427, %v483
  %v500 = vsel %vm329, %v440, %v489
  %v501 = vsel %vm329, %v443, %v491
  %502 = vmatprep.subr.bf16.mxu0 0
  %503 = vmatpush1.bf16.msra.mxu0 %v262
  %504 = vmatprep.subr.bf16.mxu0 0
  %505 = vmatpush1.bf16.msra.mxu0 %v263
  %506 = vmatprep.subr.bf16.mxu0 0
  %507 = vmatpush1.bf16.msra.mxu0 %v264
  %508 = vmatprep.subr.bf16.mxu0 0
  %509 = vmatpush1.bf16.msra.mxu0 %v265
  %510 = vmatprep.subr.bf16.mxu0 0
  %511 = vmatpush1.bf16.msra.mxu0 0
  %512 = vmatprep.subr.bf16.mxu0 0
  %513 = vmatpush1.bf16.msra.mxu0 0
  %514 = vmatprep.subr.bf16.mxu0 0
  %515 = vmatpush1.bf16.msra.mxu0 0
  %516 = vmatprep.subr.bf16.mxu0 0
  %517 = vmatpush1.bf16.msra.mxu0 0
  %518 = vmatprep.subr.bf16.mxu0 0
  %519 = vmatpush1.bf16.msra.mxu0 0
  %520 = vmatprep.subr.bf16.mxu0 0
  %521 = vmatpush1.bf16.msra.mxu0 0
  %522 = vmatprep.subr.bf16.mxu0 0
  %523 = vmatpush1.bf16.msra.mxu0 0
  %524 = vmatprep.subr.bf16.mxu0 0
  %525 = vmatpush1.bf16.msra.mxu0 0
  %526 = vmatprep.subr.bf16.mxu0 0
  %527 = vmatpush1.bf16.msra.mxu0 0
  %528 = vmatprep.subr.bf16.mxu0 0
  %529 = vmatpush1.bf16.msra.mxu0 0
  %530 = vmatprep.subr.bf16.mxu0 0
  %531 = vmatpush1.bf16.msra.mxu0 0
  %532 = vmatprep.subr.bf16.mxu0 0
  %533 = vmatpush1.bf16.msra.mxu0 0
  %534 = vmatprep.mubr.bf16.mxu0 0
  %535 = vmatmul.mubr.bf16.gmra.mrb[0].mxu0 %v331
  %v536 = vpop.f32.mrb[0].mxu0
  %v537 = vadd.f32 0.0, %v536
  %v538 = vpop.f32.mrb[0].mxu0
  %v539 = vpop.f32.mrb[0].mxu0
  %v540 = vadd.f32 0.0, %v539
  %v541 = vpop.f32.mrb[0].mxu0
  %542 = vmatprep.mubr.bf16.mxu0 0
  %543 = vmatmul.mubr.bf16.gmra.mrb[0].mxu0 %v334
  %v544 = vpop.f32.mrb[0].mxu0
  %v545 = vadd.f32 0.0, %v544
  %v546 = vpop.f32.mrb[0].mxu0
  %v547 = vpop.f32.mrb[0].mxu0
  %v548 = vadd.f32 0.0, %v547
  %v549 = vpop.f32.mrb[0].mxu0
  %550 = vmatprep.mubr.bf16.mxu0 0
  %551 = vmatmul.mubr.bf16.gmra.mrb[0].mxu0 %v337
  %v552 = vpop.f32.mrb[0].mxu0
  %v553 = vadd.f32 0.0, %v552
  %v554 = vpop.f32.mrb[0].mxu0
  %v555 = vpop.f32.mrb[0].mxu0
  %v556 = vadd.f32 0.0, %v555
  %v557 = vpop.f32.mrb[0].mxu0
  %558 = vmatprep.mubr.bf16.mxu0 0
  %559 = vmatmul.mubr.bf16.gmra.mrb[0].mxu0 %v340
  %v560 = vpop.f32.mrb[0].mxu0
  %v561 = vadd.f32 0.0, %v560
  %v562 = vpop.f32.mrb[0].mxu0
  %v563 = vpop.f32.mrb[0].mxu0
  %v564 = vadd.f32 0.0, %v563
  %v565 = vpop.f32.mrb[0].mxu0
  %566 = vmatprep.mubr.bf16.mxu0 0
  %567 = vmatmul.mubr.bf16.gmra.mrb[0].mxu0 %v343
  %v568 = vpop.f32.mrb[0].mxu0
  %v569 = vadd.f32 0.0, %v568
  %v570 = vpop.f32.mrb[0].mxu0
  %v571 = vpop.f32.mrb[0].mxu0
  %v572 = vadd.f32 0.0, %v571
  %v573 = vpop.f32.mrb[0].mxu0
  %574 = vmatprep.mubr.bf16.mxu0 0
  %575 = vmatmul.mubr.bf16.gmra.mrb[0].mxu0 %v346
  %v576 = vpop.f32.mrb[0].mxu0
  %v577 = vadd.f32 0.0, %v576
  %v578 = vpop.f32.mrb[0].mxu0
  %v579 = vpop.f32.mrb[0].mxu0
  %v580 = vadd.f32 0.0, %v579
  %v581 = vpop.f32.mrb[0].mxu0
  %582 = vmatprep.mubr.bf16.mxu0 0
  %583 = vmatmul.mubr.bf16.gmra.mrb[0].mxu0 %v349
  %v584 = vpop.f32.mrb[0].mxu0
  %v585 = vadd.f32 0.0, %v584
  %v586 = vpop.f32.mrb[0].mxu0
  %v587 = vpop.f32.mrb[0].mxu0
  %v588 = vadd.f32 0.0, %v587
  %v589 = vpop.f32.mrb[0].mxu0
  %590 = vmatprep.mubr.bf16.mxu0 0
  %591 = vmatmul.mubr.bf16.gmra.mrb[0].mxu0 %v352
  %v592 = vpop.f32.mrb[0].mxu0
  %v593 = vadd.f32 0.0, %v592
  %v594 = vpop.f32.mrb[0].mxu0
  %v595 = vpop.f32.mrb[0].mxu0
  %v596 = vadd.f32 0.0, %v595
  %v597 = vpop.f32.mrb[0].mxu0
  %598 = vmatprep.mubr.bf16.mxu0 0
  %599 = vmatmul.mubr.bf16.gmra.mrb[0].mxu0 %v355
  %v600 = vpop.f32.mrb[0].mxu0
  %v601 = vadd.f32 0.0, %v600
  %v602 = vpop.f32.mrb[0].mxu0
  %v603 = vpop.f32.mrb[0].mxu0
  %v604 = vadd.f32 0.0, %v603
  %v605 = vpop.f32.mrb[0].mxu0
  %606 = vdwg.mxu0
  %609 = vrot.lane.b32.xlu0 %v545, 64
  %v610 = vpop.permute.xlu0 %609
  %611 = vrot.lane.b32.xlu0 %v548, 64
  %v612 = vpop.permute.xlu0 %611
  %617 = vrot.lane.b32.xlu0 %v561, 64
  %v618 = vpop.permute.xlu0 %617
  %619 = vrot.lane.b32.xlu0 %v564, 64
  %v620 = vpop.permute.xlu0 %619
  %625 = vrot.lane.b32.xlu0 %v577, 64
  %v626 = vpop.permute.xlu0 %625
  %627 = vrot.lane.b32.xlu0 %v580, 64
  %v628 = vpop.permute.xlu0 %627
  %633 = vrot.lane.b32.xlu0 %v593, 64
  %v634 = vpop.permute.xlu0 %633
  %635 = vrot.lane.b32.xlu0 %v596, 64
  %v636 = vpop.permute.xlu0 %635
  %v639 = vsel %vm329, %v537, %v610
  %v640 = vsel %vm329, %v540, %v612
  %v641 = vsel %vm329, %v553, %v618
  %v642 = vsel %vm329, %v556, %v620
  %v643 = vsel %vm329, %v569, %v626
  %v644 = vsel %vm329, %v572, %v628
  %v645 = vsel %vm329, %v585, %v634
  %v646 = vsel %vm329, %v588, %v636
  %v647 = vpack.c.bf16 %v495, %v494
  %v648 = vpack.c.bf16 %v497, %v496
  %v649 = vpack.c.bf16 %v499, %v498
  %v650 = vpack.c.bf16 %v501, %v500
  %v651 = vpack.c.bf16 %v459, %v456
  %v652 = vpack.c.bf16 %v640, %v639
  %v653 = vpack.c.bf16 %v642, %v641
  %v654 = vpack.c.bf16 %v644, %v643
  %v655 = vpack.c.bf16 %v646, %v645
  %v656 = vpack.c.bf16 %v604, %v601
  %v657 = vld [vmem:[%s4] sm:$0xf]
  %v658 = vld [vmem:[%s4 + $0x4] sm:$0xf]
  %v659 = vld [vmem:[%s4 + $0x8] sm:$0xf]
  %v660 = vld [vmem:[%s4 + $0xc] sm:$0xf]
  %v661 = vld [vmem:[%s4 + $0x10] sm:$0xf]
  %v662 = vld [vmem:[%s4 + $0x14] sm:$0xf]
  %v663 = vld [vmem:[%s4 + $0x18] sm:$0xf]
  %v664 = vld [vmem:[%s4 + $0x1c] sm:$0xf]
  %v665 = vld [vmem:[%s4 + $0x20] sm:$0xf]
  %v666 = vld [vmem:[%s4 + $0x24] sm:$0xf]
  %v667 = vld [vmem:[%s4 + $0x28] sm:$0xf]
  %v668 = vld [vmem:[%s4 + $0x2c] sm:$0xf]
  %v669 = vld [vmem:[%s4 + $0x30] sm:$0xf]
  %v670 = vld [vmem:[%s4 + $0x34] sm:$0xf]
  %v671 = vld [vmem:[%s4 + $0x38] sm:$0xf]
  %v672 = vld [vmem:[%s4 + $0x3c] sm:$0xf]
  %v673 = vld [vmem:[%s4 + $0x40] sm:$0xf]
  %v674 = vld [vmem:[%s4 + $0x44] sm:$0xf]
  %v675 = vld [vmem:[%s4 + $0x48] sm:$0xf]
  %v676 = vld [vmem:[%s4 + $0x4c] sm:$0xf]
  %v677 = vld [vmem:[%s4 + $0x50] sm:$0xf]
  %v678 = vld [vmem:[%s4 + $0x54] sm:$0xf]
  %v679 = vld [vmem:[%s4 + $0x58] sm:$0xf]
  %v680 = vld [vmem:[%s4 + $0x5c] sm:$0xf]
  %v681 = vld [vmem:[%s4 + $0x60] sm:$0xf]
  %v682 = vld [vmem:[%s4 + $0x64] sm:$0xf]
  %v683 = vld [vmem:[%s4 + $0x68] sm:$0xf]
  %v684 = vld [vmem:[%s4 + $0x6c] sm:$0xf]
  %v685 = vld [vmem:[%s4 + $0x70] sm:$0xf]
  %v686 = vld [vmem:[%s4 + $0x74] sm:$0xf]
  %v687 = vld [vmem:[%s4 + $0x78] sm:$0xf]
  %v688 = vld [vmem:[%s4 + $0x7c] sm:$0xf]
  %v689 = vld [vmem:[%s4 + $0x80] sm:$0xf]
  %v690 = vld [vmem:[%s4 + $0x84] sm:$0xf]
  %v691 = vld [vmem:[%s4 + $0x88] sm:$0xf]
  %v692 = vld [vmem:[%s4 + $0x8c] sm:$0xf]
  %v693 = vld [vmem:[%s4 + $0x90] sm:$0xf]
  %v694 = vld [vmem:[%s4 + $0x94] sm:$0xf]
  %v695 = vld [vmem:[%s4 + $0x98] sm:$0xf]
  %v696 = vld [vmem:[%s4 + $0x9c] sm:$0xf]
  %v697 = vld [vmem:[%s4 + $0xa0] sm:$0xf]
  %v698 = vld [vmem:[%s4 + $0xa4] sm:$0xf]
  %v699 = vld [vmem:[%s4 + $0xa8] sm:$0xf]
  %v700 = vld [vmem:[%s4 + $0xac] sm:$0xf]
  %v701 = vld [vmem:[%s4 + $0xb0] sm:$0xf]
  %v702 = vld [vmem:[%s4 + $0xb4] sm:$0xf]
  %v703 = vld [vmem:[%s4 + $0xb8] sm:$0xf]
  %v704 = vld [vmem:[%s4 + $0xbc] sm:$0xf]
  %v705 = vld [vmem:[%s4 + $0xc0] sm:$0xf]
  %v706 = vld [vmem:[%s4 + $0xc4] sm:$0xf]
  %v707 = vld [vmem:[%s4 + $0xc8] sm:$0xf]
  %v708 = vld [vmem:[%s4 + $0xcc] sm:$0xf]
  %v709 = vld [vmem:[%s4 + $0xd0] sm:$0xf]
  %v710 = vld [vmem:[%s4 + $0xd4] sm:$0xf]
  %v711 = vld [vmem:[%s4 + $0xd8] sm:$0xf]
  %v712 = vld [vmem:[%s4 + $0xdc] sm:$0xf]
  %v713 = vld [vmem:[%s4 + $0xe0] sm:$0xf]
  %v714 = vld [vmem:[%s4 + $0xe4] sm:$0xf]
  %v715 = vld [vmem:[%s4 + $0xe8] sm:$0xf]
  %v716 = vld [vmem:[%s4 + $0xec] sm:$0xf]
  %v717 = vld [vmem:[%s4 + $0xf0] sm:$0xf]
  %v718 = vld [vmem:[%s4 + $0xf4] sm:$0xf]
  %v719 = vld [vmem:[%s4 + $0xf8] sm:$0xf]
  %v720 = vld [vmem:[%s4 + $0xfc] sm:$0xf]
  %v721 = vld [vmem:[%s4 + $0x100] sm:$0xf]
  %v722 = vld [vmem:[%s4 + $0x104] sm:$0xf]
  %v723 = vld [vmem:[%s4 + $0x108] sm:$0xf]
  %v724 = vld [vmem:[%s4 + $0x10c] sm:$0xf]
  %v725 = vld [vmem:[%s4 + $0x110] sm:$0xf]
  %v726 = vld [vmem:[%s4 + $0x114] sm:$0xf]
  %v727 = vld [vmem:[%s4 + $0x118] sm:$0xf]
  %v728 = vld [vmem:[%s4 + $0x11c] sm:$0xf]
  %v729 = vld [vmem:[%s7] sm:$0x1]
  %v731 = vlaneseq
  %v732 = vshrl.u32 %v731, 7
  %v733 = vsub.s32 0, %v732
  %v734 = vrot.slane %v729, %v733
  %v808 = vunpack.c.l.b16 %v657
  %v809 = vunpack.c.l.b16 %v658
  %v810 = vunpack.c.l.b16 %v659
  %v811 = vunpack.c.l.b16 %v660
  %v812 = vunpack.c.l.b16 %v661
  %v813 = vunpack.c.l.b16 %v662
  %v814 = vunpack.c.l.b16 %v663
  %v815 = vunpack.c.l.b16 %v664
  %v816 = vunpack.c.l.b16 %v665
  %v817 = vunpack.c.l.b16 %v666
  %v818 = vunpack.c.l.b16 %v667
  %v819 = vunpack.c.l.b16 %v668
  %v820 = vunpack.c.l.b16 %v669
  %v821 = vunpack.c.l.b16 %v670
  %v822 = vunpack.c.l.b16 %v671
  %v823 = vunpack.c.l.b16 %v672
  %v824 = vunpack.c.l.b16 %v673
  %v825 = vunpack.c.l.b16 %v674
  %v826 = vunpack.c.l.b16 %v675
  %v827 = vunpack.c.l.b16 %v676
  %v828 = vunpack.c.l.b16 %v677
  %v829 = vunpack.c.l.b16 %v678
  %v830 = vunpack.c.l.b16 %v679
  %v831 = vunpack.c.l.b16 %v680
  %v832 = vunpack.c.l.b16 %v681
  %v833 = vunpack.c.l.b16 %v682
  %v834 = vunpack.c.l.b16 %v683
  %v835 = vunpack.c.l.b16 %v684
  %v836 = vunpack.c.l.b16 %v685
  %v837 = vunpack.c.l.b16 %v686
  %v838 = vunpack.c.l.b16 %v687
  %v839 = vunpack.c.l.b16 %v688
  %v840 = vunpack.c.l.b16 %v689
  %v841 = vunpack.c.l.b16 %v690
  %v842 = vunpack.c.l.b16 %v691
  %v843 = vunpack.c.l.b16 %v692
  %v844 = vunpack.c.l.b16 %v693
  %v845 = vunpack.c.l.b16 %v694
  %v846 = vunpack.c.l.b16 %v695
  %v847 = vunpack.c.l.b16 %v696
  %v848 = vunpack.c.l.b16 %v697
  %v849 = vunpack.c.l.b16 %v698
  %v850 = vunpack.c.l.b16 %v699
  %v851 = vunpack.c.l.b16 %v700
  %v852 = vunpack.c.l.b16 %v701
  %v853 = vunpack.c.l.b16 %v702
  %v854 = vunpack.c.l.b16 %v703
  %v855 = vunpack.c.l.b16 %v704
  %v856 = vunpack.c.l.b16 %v705
  %v857 = vunpack.c.l.b16 %v706
  %v858 = vunpack.c.l.b16 %v707
  %v859 = vunpack.c.l.b16 %v708
  %v860 = vunpack.c.l.b16 %v709
  %v861 = vunpack.c.l.b16 %v710
  %v862 = vunpack.c.l.b16 %v711
  %v863 = vunpack.c.l.b16 %v712
  %v864 = vunpack.c.l.b16 %v713
  %v865 = vunpack.c.l.b16 %v714
  %v866 = vunpack.c.l.b16 %v715
  %v867 = vunpack.c.l.b16 %v716
  %v868 = vunpack.c.l.b16 %v717
  %v869 = vunpack.c.l.b16 %v718
  %v870 = vunpack.c.l.b16 %v719
  %v871 = vunpack.c.l.b16 %v720
  %v872 = vunpack.c.l.b16 %v721
  %v873 = vunpack.c.l.b16 %v722
  %v874 = vunpack.c.l.b16 %v723
  %v875 = vunpack.c.l.b16 %v724
  %v876 = vunpack.c.l.b16 %v725
  %v877 = vunpack.c.l.b16 %v726
  %v878 = vunpack.c.l.b16 %v727
  %v879 = vunpack.c.l.b16 %v728
  %v880 = vpack.c.b16 %v809, %v808
  %v881 = vpack.c.b16 %v811, %v810
  %v882 = vpack.c.b16 %v813, %v812
  %v883 = vpack.c.b16 %v815, %v814
  %v884 = vpack.c.b16 %v817, %v816
  %v885 = vpack.c.b16 %v819, %v818
  %v886 = vpack.c.b16 %v821, %v820
  %v887 = vpack.c.b16 %v823, %v822
  %v888 = vpack.c.b16 %v825, %v824
  %v889 = vpack.c.b16 %v827, %v826
  %v890 = vpack.c.b16 %v829, %v828
  %v891 = vpack.c.b16 %v831, %v830
  %v892 = vpack.c.b16 %v833, %v832
  %v893 = vpack.c.b16 %v835, %v834
  %v894 = vpack.c.b16 %v837, %v836
  %v895 = vpack.c.b16 %v839, %v838
  %v896 = vpack.c.b16 %v841, %v840
  %v897 = vpack.c.b16 %v843, %v842
  %v898 = vpack.c.b16 %v845, %v844
  %v899 = vpack.c.b16 %v847, %v846
  %v900 = vpack.c.b16 %v849, %v848
  %v901 = vpack.c.b16 %v851, %v850
  %v902 = vpack.c.b16 %v853, %v852
  %v903 = vpack.c.b16 %v855, %v854
  %v904 = vpack.c.b16 %v857, %v856
  %v905 = vpack.c.b16 %v859, %v858
  %v906 = vpack.c.b16 %v861, %v860
  %v907 = vpack.c.b16 %v863, %v862
  %v908 = vpack.c.b16 %v865, %v864
  %v909 = vpack.c.b16 %v867, %v866
  %v910 = vpack.c.b16 %v869, %v868
  %v911 = vpack.c.b16 %v871, %v870
  %v912 = vpack.c.b16 %v873, %v872
  %v913 = vpack.c.b16 %v875, %v874
  %v914 = vpack.c.b16 %v877, %v876
  %v915 = vpack.c.b16 %v879, %v878
  %v953 = vsel %vm329, %v651, 0
  %v956 = vsel %vm329, %v656, 0
  %958 = vmatprep.subr.bf16.mxu0 0
  %959 = vmatpush1.bf16.msra.mxu0 %v880
  %960 = vmatprep.subr.bf16.mxu0 0
  %961 = vmatpush1.bf16.msra.mxu0 %v881
  %962 = vmatprep.subr.bf16.mxu0 0
  %963 = vmatpush1.bf16.msra.mxu0 %v882
  %964 = vmatprep.subr.bf16.mxu0 0
  %965 = vmatpush1.bf16.msra.mxu0 %v883
  %966 = vmatprep.subr.bf16.mxu0 0
  %967 = vmatpush1.bf16.msra.mxu0 %v884
  %968 = vmatprep.subr.bf16.mxu0 0
  %969 = vmatpush1.bf16.msra.mxu0 %v885
  %970 = vmatprep.subr.bf16.mxu0 0
  %971 = vmatpush1.bf16.msra.mxu0 %v886
  %972 = vmatprep.subr.bf16.mxu0 0
  %973 = vmatpush1.bf16.msra.mxu0 %v887
  %974 = vmatprep.subr.bf16.mxu0 0
  %975 = vmatpush1.bf16.msra.mxu0 %v888
  %976 = vmatprep.subr.bf16.mxu0 0
  %977 = vmatpush1.bf16.msra.mxu0 %v889
  %978 = vmatprep.subr.bf16.mxu0 0
  %979 = vmatpush1.bf16.msra.mxu0 %v890
  %980 = vmatprep.subr.bf16.mxu0 0
  %981 = vmatpush1.bf16.msra.mxu0 %v891
  %982 = vmatprep.subr.bf16.mxu0 0
  %983 = vmatpush1.bf16.msra.mxu0 %v892
  %984 = vmatprep.subr.bf16.mxu0 0
  %985 = vmatpush1.bf16.msra.mxu0 %v893
  %986 = vmatprep.subr.bf16.mxu0 0
  %987 = vmatpush1.bf16.msra.mxu0 %v894
  %988 = vmatprep.subr.bf16.mxu0 0
  %989 = vmatpush1.bf16.msra.mxu0 %v895
  %990 = vmatprep.mubr.bf16.mxu0 %v648
  %991 = vmatmul.mubr.bf16.gmra.mrb[0].mxu0 %v647
  %v992 = vpop.f32.mrb[0].mxu0
  %v993 = vadd.f32 %v734, %v992
  %v994 = vpop.f32.mrb[0].mxu0
  %v995 = vpop.f32.mrb[0].mxu0
  %v996 = vadd.f32 %v734, %v995
  %v997 = vpop.f32.mrb[0].mxu0
  %998 = vmatprep.mubr.bf16.mxu0 %v653
  %999 = vmatmul.mubr.bf16.gmra.mrb[0].mxu0 %v652
  %v1000 = vpop.f32.mrb[0].mxu0
  %v1001 = vadd.f32 %v734, %v1000
  %v1002 = vpop.f32.mrb[0].mxu0
  %v1003 = vpop.f32.mrb[0].mxu0
  %v1004 = vadd.f32 %v734, %v1003
  %v1005 = vpop.f32.mrb[0].mxu0
  %1006 = vdwg.mxu0
  %1007 = vmatprep.subr.bf16.mxu0 0
  %1008 = vmatpush1.bf16.msra.mxu0 %v896
  %1009 = vmatprep.subr.bf16.mxu0 0
  %1010 = vmatpush1.bf16.msra.mxu0 %v897
  %1011 = vmatprep.subr.bf16.mxu0 0
  %1012 = vmatpush1.bf16.msra.mxu0 %v898
  %1013 = vmatprep.subr.bf16.mxu0 0
  %1014 = vmatpush1.bf16.msra.mxu0 %v899
  %1015 = vmatprep.subr.bf16.mxu0 0
  %1016 = vmatpush1.bf16.msra.mxu0 %v900
  %1017 = vmatprep.subr.bf16.mxu0 0
  %1018 = vmatpush1.bf16.msra.mxu0 %v901
  %1019 = vmatprep.subr.bf16.mxu0 0
  %1020 = vmatpush1.bf16.msra.mxu0 %v902
  %1021 = vmatprep.subr.bf16.mxu0 0
  %1022 = vmatpush1.bf16.msra.mxu0 %v903
  %1023 = vmatprep.subr.bf16.mxu0 0
  %1024 = vmatpush1.bf16.msra.mxu0 %v904
  %1025 = vmatprep.subr.bf16.mxu0 0
  %1026 = vmatpush1.bf16.msra.mxu0 %v905
  %1027 = vmatprep.subr.bf16.mxu0 0
  %1028 = vmatpush1.bf16.msra.mxu0 %v906
  %1029 = vmatprep.subr.bf16.mxu0 0
  %1030 = vmatpush1.bf16.msra.mxu0 %v907
  %1031 = vmatprep.subr.bf16.mxu0 0
  %1032 = vmatpush1.bf16.msra.mxu0 %v908
  %1033 = vmatprep.subr.bf16.mxu0 0
  %1034 = vmatpush1.bf16.msra.mxu0 %v909
  %1035 = vmatprep.subr.bf16.mxu0 0
  %1036 = vmatpush1.bf16.msra.mxu0 %v910
  %1037 = vmatprep.subr.bf16.mxu0 0
  %1038 = vmatpush1.bf16.msra.mxu0 %v911
  %1039 = vmatprep.mubr.bf16.mxu0 %v650
  %1040 = vmatmul.mubr.bf16.gmra.mrb[0].mxu0 %v649
  %v1041 = vpop.f32.mrb[0].mxu0
  %v1042 = vadd.f32 %v993, %v1041
  %v1043 = vpop.f32.mrb[0].mxu0
  %v1044 = vpop.f32.mrb[0].mxu0
  %v1045 = vadd.f32 %v996, %v1044
  %v1046 = vpop.f32.mrb[0].mxu0
  %1047 = vmatprep.mubr.bf16.mxu0 %v655
  %1048 = vmatmul.mubr.bf16.gmra.mrb[0].mxu0 %v654
  %v1049 = vpop.f32.mrb[0].mxu0
  %v1050 = vadd.f32 %v1001, %v1049
  %v1051 = vpop.f32.mrb[0].mxu0
  %v1052 = vpop.f32.mrb[0].mxu0
  %v1053 = vadd.f32 %v1004, %v1052
  %v1054 = vpop.f32.mrb[0].mxu0
  %1055 = vdwg.mxu0
  %1056 = vmatprep.subr.bf16.mxu0 0
  %1057 = vmatpush1.bf16.msra.mxu0 %v912
  %1058 = vmatprep.subr.bf16.mxu0 0
  %1059 = vmatpush1.bf16.msra.mxu0 %v913
  %1060 = vmatprep.subr.bf16.mxu0 0
  %1061 = vmatpush1.bf16.msra.mxu0 %v914
  %1062 = vmatprep.subr.bf16.mxu0 0
  %1063 = vmatpush1.bf16.msra.mxu0 %v915
  %1064 = vmatprep.subr.bf16.mxu0 0
  %1065 = vmatpush1.bf16.msra.mxu0 0
  %1066 = vmatprep.subr.bf16.mxu0 0
  %1067 = vmatpush1.bf16.msra.mxu0 0
  %1068 = vmatprep.subr.bf16.mxu0 0
  %1069 = vmatpush1.bf16.msra.mxu0 0
  %1070 = vmatprep.subr.bf16.mxu0 0
  %1071 = vmatpush1.bf16.msra.mxu0 0
  %1072 = vmatprep.subr.bf16.mxu0 0
  %1073 = vmatpush1.bf16.msra.mxu0 0
  %1074 = vmatprep.subr.bf16.mxu0 0
  %1075 = vmatpush1.bf16.msra.mxu0 0
  %1076 = vmatprep.subr.bf16.mxu0 0
  %1077 = vmatpush1.bf16.msra.mxu0 0
  %1078 = vmatprep.subr.bf16.mxu0 0
  %1079 = vmatpush1.bf16.msra.mxu0 0
  %1080 = vmatprep.subr.bf16.mxu0 0
  %1081 = vmatpush1.bf16.msra.mxu0 0
  %1082 = vmatprep.subr.bf16.mxu0 0
  %1083 = vmatpush1.bf16.msra.mxu0 0
  %1084 = vmatprep.subr.bf16.mxu0 0
  %1085 = vmatpush1.bf16.msra.mxu0 0
  %1086 = vmatprep.subr.bf16.mxu0 0
  %1087 = vmatpush1.bf16.msra.mxu0 0
  %1088 = vmatprep.mubr.bf16.mxu0 0
  %1089 = vmatmul.mubr.bf16.gmra.mrb[0].mxu0 %v953
  %v1090 = vpop.f32.mrb[0].mxu0
  %v1091 = vadd.f32 %v1042, %v1090
  %v1092 = vpop.f32.mrb[0].mxu0
  %v1093 = vpop.f32.mrb[0].mxu0
  %v1094 = vadd.f32 %v1045, %v1093
  %v1095 = vpop.f32.mrb[0].mxu0
  %1096 = vmatprep.mubr.bf16.mxu0 0
  %1097 = vmatmul.mubr.bf16.gmra.mrb[0].mxu0 %v956
  %v1098 = vpop.f32.mrb[0].mxu0
  %v1099 = vadd.f32 %v1050, %v1098
  %v1100 = vpop.f32.mrb[0].mxu0
  %v1101 = vpop.f32.mrb[0].mxu0
  %v1102 = vadd.f32 %v1053, %v1101
  %v1103 = vpop.f32.mrb[0].mxu0
  %1104 = vdwg.mxu0
  %v1105 = vmax.f32 %v1091, 0.0
  %v1106 = vmax.f32 %v1094, 0.0
  %v1107 = vmax.f32 %v1099, 0.0
  %v1108 = vmax.f32 %v1102, 0.0
  %v1109 = vpack.c.bf16 %v1106, %v1105
  %v1110 = vpack.c.bf16 %v1108, %v1107
  %v1111 = vld [vmem:[%s2] sm:$0xf]
  %v1112 = vld [vmem:[%s2 + $0x4] sm:$0xf]
  %v1113 = vld [vmem:[%s2 + $0x8] sm:$0xf]
  %v1114 = vld [vmem:[%s2 + $0xc] sm:$0xf]
  %v1115 = vld [vmem:[%s2 + $0x10] sm:$0xf]
  %v1116 = vld [vmem:[%s2 + $0x14] sm:$0xf]
  %v1117 = vld [vmem:[%s2 + $0x18] sm:$0xf]
  %v1118 = vld [vmem:[%s2 + $0x1c] sm:$0xf]
  %v1119 = vld [vmem:[%s2 + $0x20] sm:$0xf]
  %v1129 = vunpack.c.l.b16 %v1111
  %v1130 = vunpack.c.l.b16 %v1112
  %v1131 = vunpack.c.l.b16 %v1113
  %v1132 = vunpack.c.l.b16 %v1114
  %v1133 = vunpack.c.l.b16 %v1115
  %v1134 = vunpack.c.l.b16 %v1116
  %v1135 = vunpack.c.l.b16 %v1117
  %v1136 = vunpack.c.l.b16 %v1118
  %v1137 = vunpack.c.l.b16 %v1119
  %v1138 = vpack.c.b16 %v1130, %v1129
  %v1139 = vpack.c.b16 %v1132, %v1131
  %v1140 = vpack.c.b16 %v1134, %v1133
  %v1141 = vpack.c.b16 %v1136, %v1135
  %v1142 = vpack.c.b16 %v1137, %v1137
  %vm1143 = vcmask 130048
  %v1145 = vsel %vm1143, %v1138, 0
  %v1148 = vsel %vm1143, %v1139, 0
  %v1151 = vsel %vm1143, %v1140, 0
  %v1154 = vsel %vm1143, %v1141, 0
  %v1157 = vsel %vm1143, %v1142, 0
  %1159 = vmatprep.subr.bf16.mxu0 0
  %1160 = vmatpush1.bf16.msra.mxu0 %v1109
  %1161 = vmatprep.subr.bf16.mxu0 0
  %1162 = vmatpush1.bf16.msra.mxu0 0
  %1163 = vmatprep.subr.bf16.mxu0 0
  %1164 = vmatpush1.bf16.msra.mxu0 0
  %1165 = vmatprep.subr.bf16.mxu0 0
  %1166 = vmatpush1.bf16.msra.mxu0 0
  %1167 = vmatprep.subr.bf16.mxu0 0
  %1168 = vmatpush1.bf16.msra.mxu0 0
  %1169 = vmatprep.subr.bf16.mxu0 0
  %1170 = vmatpush1.bf16.msra.mxu0 0
  %1171 = vmatprep.subr.bf16.mxu0 0
  %1172 = vmatpush1.bf16.msra.mxu0 0
  %1173 = vmatprep.subr.bf16.mxu0 0
  %1174 = vmatpush1.bf16.msra.mxu0 0
  %1175 = vmatprep.subr.bf16.mxu0 0
  %1176 = vmatpush1.bf16.msra.mxu0 0
  %1177 = vmatprep.subr.bf16.mxu0 0
  %1178 = vmatpush1.bf16.msra.mxu0 0
  %1179 = vmatprep.subr.bf16.mxu0 0
  %1180 = vmatpush1.bf16.msra.mxu0 0
  %1181 = vmatprep.subr.bf16.mxu0 0
  %1182 = vmatpush1.bf16.msra.mxu0 0
  %1183 = vmatprep.subr.bf16.mxu0 0
  %1184 = vmatpush1.bf16.msra.mxu0 0
  %1185 = vmatprep.subr.bf16.mxu0 0
  %1186 = vmatpush1.bf16.msra.mxu0 0
  %1187 = vmatprep.subr.bf16.mxu0 0
  %1188 = vmatpush1.bf16.msra.mxu0 0
  %1189 = vmatprep.subr.bf16.mxu0 0
  %1190 = vmatpush1.bf16.msra.mxu0 0
  %1191 = vmatprep.mubr.bf16.mxu0 0
  %1192 = vmatmul.mubr.bf16.gmra.mrb[0].mxu0 %v1145
  %v1193 = vpop.f32.mrb[0].mxu0
  %v1194 = vadd.f32 0.0, %v1193
  %v1195 = vpop.f32.mrb[0].mxu0
  %v1196 = vpop.f32.mrb[0].mxu0
  %v1197 = vadd.f32 0.0, %v1196
  %v1198 = vpop.f32.mrb[0].mxu0
  %1199 = vmatprep.mubr.bf16.mxu0 0
  %1200 = vmatmul.mubr.bf16.gmra.mrb[0].mxu0 %v1148
  %v1201 = vpop.f32.mrb[0].mxu0
  %v1202 = vadd.f32 0.0, %v1201
  %v1203 = vpop.f32.mrb[0].mxu0
  %v1204 = vpop.f32.mrb[0].mxu0
  %v1205 = vadd.f32 0.0, %v1204
  %v1206 = vpop.f32.mrb[0].mxu0
  %1207 = vmatprep.mubr.bf16.mxu0 0
  %1208 = vmatmul.mubr.bf16.gmra.mrb[0].mxu0 %v1151
  %v1209 = vpop.f32.mrb[0].mxu0
  %v1210 = vadd.f32 0.0, %v1209
  %v1211 = vpop.f32.mrb[0].mxu0
  %v1212 = vpop.f32.mrb[0].mxu0
  %v1213 = vadd.f32 0.0, %v1212
  %v1214 = vpop.f32.mrb[0].mxu0
  %1215 = vmatprep.mubr.bf16.mxu0 0
  %1216 = vmatmul.mubr.bf16.gmra.mrb[0].mxu0 %v1154
  %v1217 = vpop.f32.mrb[0].mxu0
  %v1218 = vadd.f32 0.0, %v1217
  %v1219 = vpop.f32.mrb[0].mxu0
  %v1220 = vpop.f32.mrb[0].mxu0
  %v1221 = vadd.f32 0.0, %v1220
  %v1222 = vpop.f32.mrb[0].mxu0
  %1223 = vmatprep.mubr.bf16.mxu0 0
  %1224 = vmatmul.mubr.bf16.gmra.mrb[0].mxu0 %v1157
  %v1225 = vpop.f32.mrb[0].mxu0
  %v1226 = vadd.f32 0.0, %v1225
  %v1227 = vpop.f32.mrb[0].mxu0
  %v1228 = vpop.f32.mrb[0].mxu0
  %v1229 = vpop.f32.mrb[0].mxu0
  %1230 = vdwg.mxu0
  %1232 = vrot.lane.b32.xlu0 %v1197, 64
  %v1233 = vpop.permute.xlu0 %1232
  %1236 = vrot.lane.b32.xlu0 %v1205, 64
  %v1237 = vpop.permute.xlu0 %1236
  %1240 = vrot.lane.b32.xlu0 %v1213, 64
  %v1241 = vpop.permute.xlu0 %1240
  %1244 = vrot.lane.b32.xlu0 %v1221, 64
  %v1245 = vpop.permute.xlu0 %1244
  %v1247 = vsel %vm329, %v1194, %v1233
  %v1248 = vsel %vm329, %v1202, %v1237
  %v1249 = vsel %vm329, %v1210, %v1241
  %v1250 = vsel %vm329, %v1218, %v1245
  %1251 = vmatprep.subr.bf16.mxu0 0
  %1252 = vmatpush1.bf16.msra.mxu0 %v1110
  %1253 = vmatprep.subr.bf16.mxu0 0
  %1254 = vmatpush1.bf16.msra.mxu0 0
  %1255 = vmatprep.subr.bf16.mxu0 0
  %1256 = vmatpush1.bf16.msra.mxu0 0
  %1257 = vmatprep.subr.bf16.mxu0 0
  %1258 = vmatpush1.bf16.msra.mxu0 0
  %1259 = vmatprep.subr.bf16.mxu0 0
  %1260 = vmatpush1.bf16.msra.mxu0 0
  %1261 = vmatprep.subr.bf16.mxu0 0
  %1262 = vmatpush1.bf16.msra.mxu0 0
  %1263 = vmatprep.subr.bf16.mxu0 0
  %1264 = vmatpush1.bf16.msra.mxu0 0
  %1265 = vmatprep.subr.bf16.mxu0 0
  %1266 = vmatpush1.bf16.msra.mxu0 0
  %1267 = vmatprep.subr.bf16.mxu0 0
  %1268 = vmatpush1.bf16.msra.mxu0 0
  %1269 = vmatprep.subr.bf16.mxu0 0
  %1270 = vmatpush1.bf16.msra.mxu0 0
  %1271 = vmatprep.subr.bf16.mxu0 0
  %1272 = vmatpush1.bf16.msra.mxu0 0
  %1273 = vmatprep.subr.bf16.mxu0 0
  %1274 = vmatpush1.bf16.msra.mxu0 0
  %1275 = vmatprep.subr.bf16.mxu0 0
  %1276 = vmatpush1.bf16.msra.mxu0 0
  %1277 = vmatprep.subr.bf16.mxu0 0
  %1278 = vmatpush1.bf16.msra.mxu0 0
  %1279 = vmatprep.subr.bf16.mxu0 0
  %1280 = vmatpush1.bf16.msra.mxu0 0
  %1281 = vmatprep.subr.bf16.mxu0 0
  %1282 = vmatpush1.bf16.msra.mxu0 0
  %1283 = vmatprep.mubr.bf16.mxu0 0
  %1284 = vmatmul.mubr.bf16.gmra.mrb[0].mxu0 %v1145
  %v1285 = vpop.f32.mrb[0].mxu0
  %v1286 = vadd.f32 0.0, %v1285
  %v1287 = vpop.f32.mrb[0].mxu0
  %v1288 = vpop.f32.mrb[0].mxu0
  %v1289 = vadd.f32 0.0, %v1288
  %v1290 = vpop.f32.mrb[0].mxu0
  %1291 = vmatprep.mubr.bf16.mxu0 0
  %1292 = vmatmul.mubr.bf16.gmra.mrb[0].mxu0 %v1148
  %v1293 = vpop.f32.mrb[0].mxu0
  %v1294 = vadd.f32 0.0, %v1293
  %v1295 = vpop.f32.mrb[0].mxu0
  %v1296 = vpop.f32.mrb[0].mxu0
  %v1297 = vadd.f32 0.0, %v1296
  %v1298 = vpop.f32.mrb[0].mxu0
  %1299 = vmatprep.mubr.bf16.mxu0 0
  %1300 = vmatmul.mubr.bf16.gmra.mrb[0].mxu0 %v1151
  %v1301 = vpop.f32.mrb[0].mxu0
  %v1302 = vadd.f32 0.0, %v1301
  %v1303 = vpop.f32.mrb[0].mxu0
  %v1304 = vpop.f32.mrb[0].mxu0
  %v1305 = vadd.f32 0.0, %v1304
  %v1306 = vpop.f32.mrb[0].mxu0
  %1307 = vmatprep.mubr.bf16.mxu0 0
  %1308 = vmatmul.mubr.bf16.gmra.mrb[0].mxu0 %v1154
  %v1309 = vpop.f32.mrb[0].mxu0
  %v1310 = vadd.f32 0.0, %v1309
  %v1311 = vpop.f32.mrb[0].mxu0
  %v1312 = vpop.f32.mrb[0].mxu0
  %v1313 = vadd.f32 0.0, %v1312
  %v1314 = vpop.f32.mrb[0].mxu0
  %1315 = vmatprep.mubr.bf16.mxu0 0
  %1316 = vmatmul.mubr.bf16.gmra.mrb[0].mxu0 %v1157
  %v1317 = vpop.f32.mrb[0].mxu0
  %v1318 = vadd.f32 0.0, %v1317
  %v1319 = vpop.f32.mrb[0].mxu0
  %v1320 = vpop.f32.mrb[0].mxu0
  %v1321 = vpop.f32.mrb[0].mxu0
  %1322 = vdwg.mxu0
  %1324 = vrot.lane.b32.xlu0 %v1289, 64
  %v1325 = vpop.permute.xlu0 %1324
  %1328 = vrot.lane.b32.xlu0 %v1297, 64
  %v1329 = vpop.permute.xlu0 %1328
  %1332 = vrot.lane.b32.xlu0 %v1305, 64
  %v1333 = vpop.permute.xlu0 %1332
  %1336 = vrot.lane.b32.xlu0 %v1313, 64
  %v1337 = vpop.permute.xlu0 %1336
  %v1339 = vsel %vm329, %v1286, %v1325
  %v1340 = vsel %vm329, %v1294, %v1329
  %v1341 = vsel %vm329, %v1302, %v1333
  %v1342 = vsel %vm329, %v1310, %v1337
  %v1343 = vpack.c.bf16 %v1339, %v1247
  %v1344 = vpack.c.bf16 %v1340, %v1248
  %v1345 = vpack.c.bf16 %v1341, %v1249
  %v1346 = vpack.c.bf16 %v1342, %v1250
  %v1347 = vpack.c.bf16 %v1318, %v1226
  %v1348 = vld [vmem:[%s5] sm:$0xf]
  %v1349 = vld [vmem:[%s5 + $0x4] sm:$0xf]
  %v1350 = vld [vmem:[%s5 + $0x8] sm:$0xf]
  %v1351 = vld [vmem:[%s5 + $0xc] sm:$0xf]
  %v1352 = vld [vmem:[%s5 + $0x10] sm:$0xf]
  %v1353 = vld [vmem:[%s5 + $0x14] sm:$0xf]
  %v1354 = vld [vmem:[%s5 + $0x18] sm:$0xf]
  %v1355 = vld [vmem:[%s5 + $0x1c] sm:$0xf]
  %v1356 = vld [vmem:[%s5 + $0x20] sm:$0xf]
  %v1357 = vld [vmem:[%s5 + $0x24] sm:$0xf]
  %v1358 = vld [vmem:[%s5 + $0x28] sm:$0xf]
  %v1359 = vld [vmem:[%s5 + $0x2c] sm:$0xf]
  %v1360 = vld [vmem:[%s5 + $0x30] sm:$0xf]
  %v1361 = vld [vmem:[%s5 + $0x34] sm:$0xf]
  %v1362 = vld [vmem:[%s5 + $0x38] sm:$0xf]
  %v1363 = vld [vmem:[%s5 + $0x3c] sm:$0xf]
  %v1364 = vld [vmem:[%s5 + $0x40] sm:$0xf]
  %v1365 = vld [vmem:[%s5 + $0x44] sm:$0xf]
  %v1366 = vld [vmem:[%s5 + $0x48] sm:$0xf]
  %v1367 = vld [vmem:[%s5 + $0x4c] sm:$0xf]
  %v1368 = vld [vmem:[%s5 + $0x50] sm:$0xf]
  %v1369 = vld [vmem:[%s5 + $0x54] sm:$0xf]
  %v1370 = vld [vmem:[%s5 + $0x58] sm:$0xf]
  %v1371 = vld [vmem:[%s5 + $0x5c] sm:$0xf]
  %v1372 = vld [vmem:[%s5 + $0x60] sm:$0xf]
  %v1373 = vld [vmem:[%s5 + $0x64] sm:$0xf]
  %v1374 = vld [vmem:[%s5 + $0x68] sm:$0xf]
  %v1375 = vld [vmem:[%s5 + $0x6c] sm:$0xf]
  %v1376 = vld [vmem:[%s5 + $0x70] sm:$0xf]
  %v1377 = vld [vmem:[%s5 + $0x74] sm:$0xf]
  %v1378 = vld [vmem:[%s5 + $0x78] sm:$0xf]
  %v1379 = vld [vmem:[%s5 + $0x7c] sm:$0xf]
  %v1380 = vld [vmem:[%s5 + $0x80] sm:$0xf]
  %v1381 = vld [vmem:[%s5 + $0x84] sm:$0xf]
  %v1382 = vld [vmem:[%s5 + $0x88] sm:$0xf]
  %v1383 = vld [vmem:[%s5 + $0x8c] sm:$0xf]
  %v1384 = vld [vmem:[%s5 + $0x90] sm:$0xf]
  %v1385 = vld [vmem:[%s5 + $0x94] sm:$0xf]
  %v1386 = vld [vmem:[%s5 + $0x98] sm:$0xf]
  %v1387 = vld [vmem:[%s5 + $0x9c] sm:$0xf]
  %v1388 = vld [vmem:[%s5 + $0xa0] sm:$0xf]
  %v1389 = vld [vmem:[%s5 + $0xa4] sm:$0xf]
  %v1390 = vld [vmem:[%s5 + $0xa8] sm:$0xf]
  %v1391 = vld [vmem:[%s5 + $0xac] sm:$0xf]
  %v1392 = vld [vmem:[%s5 + $0xb0] sm:$0xf]
  %v1393 = vld [vmem:[%s5 + $0xb4] sm:$0xf]
  %v1394 = vld [vmem:[%s5 + $0xb8] sm:$0xf]
  %v1395 = vld [vmem:[%s5 + $0xbc] sm:$0xf]
  %v1396 = vld [vmem:[%s5 + $0xc0] sm:$0xf]
  %v1397 = vld [vmem:[%s5 + $0xc4] sm:$0xf]
  %v1398 = vld [vmem:[%s5 + $0xc8] sm:$0xf]
  %v1399 = vld [vmem:[%s5 + $0xcc] sm:$0xf]
  %v1400 = vld [vmem:[%s5 + $0xd0] sm:$0xf]
  %v1401 = vld [vmem:[%s5 + $0xd4] sm:$0xf]
  %v1402 = vld [vmem:[%s5 + $0xd8] sm:$0xf]
  %v1403 = vld [vmem:[%s5 + $0xdc] sm:$0xf]
  %v1404 = vld [vmem:[%s5 + $0xe0] sm:$0xf]
  %v1405 = vld [vmem:[%s5 + $0xe4] sm:$0xf]
  %v1406 = vld [vmem:[%s5 + $0xe8] sm:$0xf]
  %v1407 = vld [vmem:[%s5 + $0xec] sm:$0xf]
  %v1408 = vld [vmem:[%s5 + $0xf0] sm:$0xf]
  %v1409 = vld [vmem:[%s5 + $0xf4] sm:$0xf]
  %v1410 = vld [vmem:[%s5 + $0xf8] sm:$0xf]
  %v1411 = vld [vmem:[%s5 + $0xfc] sm:$0xf]
  %v1412 = vld [vmem:[%s5 + $0x100] sm:$0xf]
  %v1413 = vld [vmem:[%s5 + $0x104] sm:$0xf]
  %v1414 = vld [vmem:[%s5 + $0x108] sm:$0xf]
  %v1415 = vld [vmem:[%s5 + $0x10c] sm:$0xf]
  %v1416 = vld [vmem:[%s5 + $0x110] sm:$0xf]
  %v1417 = vld [vmem:[%s5 + $0x114] sm:$0xf]
  %v1418 = vld [vmem:[%s5 + $0x118] sm:$0xf]
  %v1419 = vld [vmem:[%s5 + $0x11c] sm:$0xf]
  %v1420 = vld [vmem:[%s8] sm:$0x1]
  %v1422 = vlaneseq
  %v1423 = vshrl.u32 %v1422, 7
  %v1424 = vsub.s32 0, %v1423
  %v1425 = vrot.slane %v1420, %v1424
  %v1499 = vunpack.c.l.b16 %v1348
  %v1500 = vunpack.c.l.b16 %v1349
  %v1501 = vunpack.c.l.b16 %v1350
  %v1502 = vunpack.c.l.b16 %v1351
  %v1503 = vunpack.c.l.b16 %v1352
  %v1504 = vunpack.c.l.b16 %v1353
  %v1505 = vunpack.c.l.b16 %v1354
  %v1506 = vunpack.c.l.b16 %v1355
  %v1507 = vunpack.c.l.b16 %v1356
  %v1508 = vunpack.c.l.b16 %v1357
  %v1509 = vunpack.c.l.b16 %v1358
  %v1510 = vunpack.c.l.b16 %v1359
  %v1511 = vunpack.c.l.b16 %v1360
  %v1512 = vunpack.c.l.b16 %v1361
  %v1513 = vunpack.c.l.b16 %v1362
  %v1514 = vunpack.c.l.b16 %v1363
  %v1515 = vunpack.c.l.b16 %v1364
  %v1516 = vunpack.c.l.b16 %v1365
  %v1517 = vunpack.c.l.b16 %v1366
  %v1518 = vunpack.c.l.b16 %v1367
  %v1519 = vunpack.c.l.b16 %v1368
  %v1520 = vunpack.c.l.b16 %v1369
  %v1521 = vunpack.c.l.b16 %v1370
  %v1522 = vunpack.c.l.b16 %v1371
  %v1523 = vunpack.c.l.b16 %v1372
  %v1524 = vunpack.c.l.b16 %v1373
  %v1525 = vunpack.c.l.b16 %v1374
  %v1526 = vunpack.c.l.b16 %v1375
  %v1527 = vunpack.c.l.b16 %v1376
  %v1528 = vunpack.c.l.b16 %v1377
  %v1529 = vunpack.c.l.b16 %v1378
  %v1530 = vunpack.c.l.b16 %v1379
  %v1531 = vunpack.c.l.b16 %v1380
  %v1532 = vunpack.c.l.b16 %v1381
  %v1533 = vunpack.c.l.b16 %v1382
  %v1534 = vunpack.c.l.b16 %v1383
  %v1535 = vunpack.c.l.b16 %v1384
  %v1536 = vunpack.c.l.b16 %v1385
  %v1537 = vunpack.c.l.b16 %v1386
  %v1538 = vunpack.c.l.b16 %v1387
  %v1539 = vunpack.c.l.b16 %v1388
  %v1540 = vunpack.c.l.b16 %v1389
  %v1541 = vunpack.c.l.b16 %v1390
  %v1542 = vunpack.c.l.b16 %v1391
  %v1543 = vunpack.c.l.b16 %v1392
  %v1544 = vunpack.c.l.b16 %v1393
  %v1545 = vunpack.c.l.b16 %v1394
  %v1546 = vunpack.c.l.b16 %v1395
  %v1547 = vunpack.c.l.b16 %v1396
  %v1548 = vunpack.c.l.b16 %v1397
  %v1549 = vunpack.c.l.b16 %v1398
  %v1550 = vunpack.c.l.b16 %v1399
  %v1551 = vunpack.c.l.b16 %v1400
  %v1552 = vunpack.c.l.b16 %v1401
  %v1553 = vunpack.c.l.b16 %v1402
  %v1554 = vunpack.c.l.b16 %v1403
  %v1555 = vunpack.c.l.b16 %v1404
  %v1556 = vunpack.c.l.b16 %v1405
  %v1557 = vunpack.c.l.b16 %v1406
  %v1558 = vunpack.c.l.b16 %v1407
  %v1559 = vunpack.c.l.b16 %v1408
  %v1560 = vunpack.c.l.b16 %v1409
  %v1561 = vunpack.c.l.b16 %v1410
  %v1562 = vunpack.c.l.b16 %v1411
  %v1563 = vunpack.c.l.b16 %v1412
  %v1564 = vunpack.c.l.b16 %v1413
  %v1565 = vunpack.c.l.b16 %v1414
  %v1566 = vunpack.c.l.b16 %v1415
  %v1567 = vunpack.c.l.b16 %v1416
  %v1568 = vunpack.c.l.b16 %v1417
  %v1569 = vunpack.c.l.b16 %v1418
  %v1570 = vunpack.c.l.b16 %v1419
  %v1571 = vpack.c.b16 %v1500, %v1499
  %v1572 = vpack.c.b16 %v1502, %v1501
  %v1573 = vpack.c.b16 %v1504, %v1503
  %v1574 = vpack.c.b16 %v1506, %v1505
  %v1575 = vpack.c.b16 %v1508, %v1507
  %v1576 = vpack.c.b16 %v1510, %v1509
  %v1577 = vpack.c.b16 %v1512, %v1511
  %v1578 = vpack.c.b16 %v1514, %v1513
  %v1579 = vpack.c.b16 %v1516, %v1515
  %v1580 = vpack.c.b16 %v1518, %v1517
  %v1581 = vpack.c.b16 %v1520, %v1519
  %v1582 = vpack.c.b16 %v1522, %v1521
  %v1583 = vpack.c.b16 %v1524, %v1523
  %v1584 = vpack.c.b16 %v1526, %v1525
  %v1585 = vpack.c.b16 %v1528, %v1527
  %v1586 = vpack.c.b16 %v1530, %v1529
  %v1587 = vpack.c.b16 %v1532, %v1531
  %v1588 = vpack.c.b16 %v1534, %v1533
  %v1589 = vpack.c.b16 %v1536, %v1535
  %v1590 = vpack.c.b16 %v1538, %v1537
  %v1591 = vpack.c.b16 %v1540, %v1539
  %v1592 = vpack.c.b16 %v1542, %v1541
  %v1593 = vpack.c.b16 %v1544, %v1543
  %v1594 = vpack.c.b16 %v1546, %v1545
  %v1595 = vpack.c.b16 %v1548, %v1547
  %v1596 = vpack.c.b16 %v1550, %v1549
  %v1597 = vpack.c.b16 %v1552, %v1551
  %v1598 = vpack.c.b16 %v1554, %v1553
  %v1599 = vpack.c.b16 %v1556, %v1555
  %v1600 = vpack.c.b16 %v1558, %v1557
  %v1601 = vpack.c.b16 %v1560, %v1559
  %v1602 = vpack.c.b16 %v1562, %v1561
  %v1603 = vpack.c.b16 %v1564, %v1563
  %v1604 = vpack.c.b16 %v1566, %v1565
  %v1605 = vpack.c.b16 %v1568, %v1567
  %v1606 = vpack.c.b16 %v1570, %v1569
  %v1644 = vsel %vm329, %v1347, 0
  %1646 = vmatprep.subr.bf16.mxu0 0
  %1647 = vmatpush1.bf16.msra.mxu0 %v1571
  %1648 = vmatprep.subr.bf16.mxu0 0
  %1649 = vmatpush1.bf16.msra.mxu0 %v1572
  %1650 = vmatprep.subr.bf16.mxu0 0
  %1651 = vmatpush1.bf16.msra.mxu0 %v1573
  %1652 = vmatprep.subr.bf16.mxu0 0
  %1653 = vmatpush1.bf16.msra.mxu0 %v1574
  %1654 = vmatprep.subr.bf16.mxu0 0
  %1655 = vmatpush1.bf16.msra.mxu0 %v1575
  %1656 = vmatprep.subr.bf16.mxu0 0
  %1657 = vmatpush1.bf16.msra.mxu0 %v1576
  %1658 = vmatprep.subr.bf16.mxu0 0
  %1659 = vmatpush1.bf16.msra.mxu0 %v1577
  %1660 = vmatprep.subr.bf16.mxu0 0
  %1661 = vmatpush1.bf16.msra.mxu0 %v1578
  %1662 = vmatprep.subr.bf16.mxu0 0
  %1663 = vmatpush1.bf16.msra.mxu0 %v1579
  %1664 = vmatprep.subr.bf16.mxu0 0
  %1665 = vmatpush1.bf16.msra.mxu0 %v1580
  %1666 = vmatprep.subr.bf16.mxu0 0
  %1667 = vmatpush1.bf16.msra.mxu0 %v1581
  %1668 = vmatprep.subr.bf16.mxu0 0
  %1669 = vmatpush1.bf16.msra.mxu0 %v1582
  %1670 = vmatprep.subr.bf16.mxu0 0
  %1671 = vmatpush1.bf16.msra.mxu0 %v1583
  %1672 = vmatprep.subr.bf16.mxu0 0
  %1673 = vmatpush1.bf16.msra.mxu0 %v1584
  %1674 = vmatprep.subr.bf16.mxu0 0
  %1675 = vmatpush1.bf16.msra.mxu0 %v1585
  %1676 = vmatprep.subr.bf16.mxu0 0
  %1677 = vmatpush1.bf16.msra.mxu0 %v1586
  %1678 = vmatprep.mubr.bf16.mxu0 %v1344
  %1679 = vmatmul.mubr.bf16.gmra.mrb[0].mxu0 %v1343
  %v1680 = vpop.f32.mrb[0].mxu0
  %v1681 = vadd.f32 %v1425, %v1680
  %v1682 = vpop.f32.mrb[0].mxu0
  %v1683 = vpop.f32.mrb[0].mxu0
  %v1684 = vadd.f32 %v1425, %v1683
  %v1685 = vpop.f32.mrb[0].mxu0
  %1686 = vdwg.mxu0
  %1687 = vmatprep.subr.bf16.mxu0 0
  %1688 = vmatpush1.bf16.msra.mxu0 %v1587
  %1689 = vmatprep.subr.bf16.mxu0 0
  %1690 = vmatpush1.bf16.msra.mxu0 %v1588
  %1691 = vmatprep.subr.bf16.mxu0 0
  %1692 = vmatpush1.bf16.msra.mxu0 %v1589
  %1693 = vmatprep.subr.bf16.mxu0 0
  %1694 = vmatpush1.bf16.msra.mxu0 %v1590
  %1695 = vmatprep.subr.bf16.mxu0 0
  %1696 = vmatpush1.bf16.msra.mxu0 %v1591
  %1697 = vmatprep.subr.bf16.mxu0 0
  %1698 = vmatpush1.bf16.msra.mxu0 %v1592
  %1699 = vmatprep.subr.bf16.mxu0 0
  %1700 = vmatpush1.bf16.msra.mxu0 %v1593
  %1701 = vmatprep.subr.bf16.mxu0 0
  %1702 = vmatpush1.bf16.msra.mxu0 %v1594
  %1703 = vmatprep.subr.bf16.mxu0 0
  %1704 = vmatpush1.bf16.msra.mxu0 %v1595
  %1705 = vmatprep.subr.bf16.mxu0 0
  %1706 = vmatpush1.bf16.msra.mxu0 %v1596
  %1707 = vmatprep.subr.bf16.mxu0 0
  %1708 = vmatpush1.bf16.msra.mxu0 %v1597
  %1709 = vmatprep.subr.bf16.mxu0 0
  %1710 = vmatpush1.bf16.msra.mxu0 %v1598
  %1711 = vmatprep.subr.bf16.mxu0 0
  %1712 = vmatpush1.bf16.msra.mxu0 %v1599
  %1713 = vmatprep.subr.bf16.mxu0 0
  %1714 = vmatpush1.bf16.msra.mxu0 %v1600
  %1715 = vmatprep.subr.bf16.mxu0 0
  %1716 = vmatpush1.bf16.msra.mxu0 %v1601
  %1717 = vmatprep.subr.bf16.mxu0 0
  %1718 = vmatpush1.bf16.msra.mxu0 %v1602
  %1719 = vmatprep.mubr.bf16.mxu0 %v1346
  %1720 = vmatmul.mubr.bf16.gmra.mrb[0].mxu0 %v1345
  %v1721 = vpop.f32.mrb[0].mxu0
  %v1722 = vadd.f32 %v1681, %v1721
  %v1723 = vpop.f32.mrb[0].mxu0
  %v1724 = vpop.f32.mrb[0].mxu0
  %v1725 = vadd.f32 %v1684, %v1724
  %v1726 = vpop.f32.mrb[0].mxu0
  %1727 = vdwg.mxu0
  %1728 = vmatprep.subr.bf16.mxu0 0
  %1729 = vmatpush1.bf16.msra.mxu0 %v1603
  %1730 = vmatprep.subr.bf16.mxu0 0
  %1731 = vmatpush1.bf16.msra.mxu0 %v1604
  %1732 = vmatprep.subr.bf16.mxu0 0
  %1733 = vmatpush1.bf16.msra.mxu0 %v1605
  %1734 = vmatprep.subr.bf16.mxu0 0
  %1735 = vmatpush1.bf16.msra.mxu0 %v1606
  %1736 = vmatprep.subr.bf16.mxu0 0
  %1737 = vmatpush1.bf16.msra.mxu0 0
  %1738 = vmatprep.subr.bf16.mxu0 0
  %1739 = vmatpush1.bf16.msra.mxu0 0
  %1740 = vmatprep.subr.bf16.mxu0 0
  %1741 = vmatpush1.bf16.msra.mxu0 0
  %1742 = vmatprep.subr.bf16.mxu0 0
  %1743 = vmatpush1.bf16.msra.mxu0 0
  %1744 = vmatprep.subr.bf16.mxu0 0
  %1745 = vmatpush1.bf16.msra.mxu0 0
  %1746 = vmatprep.subr.bf16.mxu0 0
  %1747 = vmatpush1.bf16.msra.mxu0 0
  %1748 = vmatprep.subr.bf16.mxu0 0
  %1749 = vmatpush1.bf16.msra.mxu0 0
  %1750 = vmatprep.subr.bf16.mxu0 0
  %1751 = vmatpush1.bf16.msra.mxu0 0
  %1752 = vmatprep.subr.bf16.mxu0 0
  %1753 = vmatpush1.bf16.msra.mxu0 0
  %1754 = vmatprep.subr.bf16.mxu0 0
  %1755 = vmatpush1.bf16.msra.mxu0 0
  %1756 = vmatprep.subr.bf16.mxu0 0
  %1757 = vmatpush1.bf16.msra.mxu0 0
  %1758 = vmatprep.subr.bf16.mxu0 0
  %1759 = vmatpush1.bf16.msra.mxu0 0
  %1760 = vmatprep.mubr.bf16.mxu0 0
  %1761 = vmatmul.mubr.bf16.gmra.mrb[0].mxu0 %v1644
  %v1762 = vpop.f32.mrb[0].mxu0
  %v1763 = vadd.f32 %v1722, %v1762
  %v1764 = vpop.f32.mrb[0].mxu0
  %v1765 = vpop.f32.mrb[0].mxu0
  %v1766 = vadd.f32 %v1725, %v1765
  %v1767 = vpop.f32.mrb[0].mxu0
  %1768 = vdwg.mxu0
  %v1769 = vmax.f32 %v1763, 0.0
  %v1770 = vmax.f32 %v1766, 0.0
  %vm1771 = vcmask 261120
  %1772 = vst.msk [vmem:[%s9] sm:$0xff] %vm1771, %v1769
  %1773 = vst.msk [vmem:[%s9 + $0x8] sm:$0xff] %vm1771, %v1770
  // Predicated region
  $region38: #{encoder_forward.1} parent=0 // pred_check
    _
  $region39: #{encoder_forward.1} parent=0 // pred_check_branch
    %1775 = sbr.rel (0) target = $region41
  $region40: #{encoder_forward.1} parent=0 // pred_region
    _
  $region41: #{encoder_forward.1} parent=0 // pred_fallthru
    _
  // Predicated region
  $region42: #{encoder_forward.1} parent=0 // pred_check
    _
  $region43: #{encoder_forward.1} parent=0 // pred_check_branch
    %1777 = sbr.rel (0) target = $region45
  $region44: #{encoder_forward.1} parent=0 // pred_region
    _
  $region45: #{encoder_forward.1} parent=0 // pred_fallthru
    _

</llo_original>
